<compile_context>
chip_gen: v6e
topology: v6e:2x2x1
jax: 0.10.0
libtpu: 0.0.40
codegen_flags: <defaults>
</compile_context>

<pallas_src>
import jax
import jax.numpy as jnp
from jax import lax
from jax.experimental import pallas as pl
from jax.experimental.pallas import tpu as pltpu


# ----------------------------- Pallas kernel --------------------------------
def _make_kernel(n_layers, nb, compute_dtype):
    """Fused kernel for `n_layers` pointwise-conv layers over `nb` batch rows.

    Ref layout (positions on the lane axis):
      x_ref  : (nb, C_in_p, TL)  input slab (channels padded to mult. of 8)
      wK_ref : (C_out_k, C_in_k) layer-K weight (last layer mean-folded)
      bK_ref : (C_out_k, 1)      layer-K bias (f32)
      o_ref  : (nb, 1, TL)       channel-mean output rows (lane dense, f32)
    """

    def kernel(*refs):
        x_ref, o_ref = refs[0], refs[-1]
        p = refs[1:-1]

        def body(n, carry):
            h = x_ref[n]                                   # (C_in_p, TL)
            if h.dtype != compute_dtype:
                h = h.astype(compute_dtype)
            for k in range(n_layers):
                w = p[2 * k][...]                          # (C_out, C_in)
                b = p[2 * k + 1][...]                      # (C_out, 1) f32
                hn = jnp.dot(w, h, preferred_element_type=jnp.float32) + b
                if k < n_layers - 1:
                    # Cast before the ReLU (exact) so the max runs on packed
                    # bf16 vregs on chips with a bf16 VALU.
                    h = jnp.maximum(hn.astype(compute_dtype), 0)
                else:
                    h = hn                                 # folded output conv: (1, TL) f32
            o_ref[n] = h.astype(o_ref.dtype)               # (1, TL)
            return carry

        lax.fori_loop(0, nb, body, None)

    return kernel


# ------------------------------- Wrapper -------------------------------------
def _largest_divisor_leq(n, cap):
    cap = max(1, min(n, cap))
    for d in range(cap, 0, -1):
        if n % d == 0:
            return d
    return 1


def fcn_array_forward(x_ncl, params, *, compute_dtype=jnp.bfloat16,
                      tl=None, target_positions=4096):
    """Fused forward pass.

    x_ncl : (N, C_in, L) input in native PyTorch NCL layout.
    params: list of (W: (C_out, C_in), b: (C_out,)) per conv layer
            (PyTorch Conv1d orientation, kernel_size dim dropped);
            params[-1] is the output conv to 128 channels.
    Returns (N, L) float32: mean over output channels.
    """
    N, C_in, L = x_ncl.shape

    # ---- fold the channel mean into the (linear) output conv (exact) -------
    w_out, b_out = params[-1]
    w_fold = jnp.mean(w_out.astype(jnp.float32), axis=0, keepdims=True)  # (1, C_last)
    b_fold = jnp.mean(b_out.astype(jnp.float32)).reshape(1, 1)           # (1, 1)

    # ---- pad channels to a multiple of 8 and length to a multiple of 128 ---
    c_in_p = max(8, -(-C_in // 8) * 8)
    l_pad = -(-L // 128) * 128

    x_c = x_ncl.astype(compute_dtype)          # cast once (halves DMA bytes for bf16)
    if c_in_p != C_in or l_pad != L:
        x_c = jnp.pad(x_c, ((0, 0), (0, c_in_p - C_in), (0, l_pad - L)))

    kparams = []
    w0, b0 = params[0]
    w0 = w0.astype(jnp.float32)
    if c_in_p != C_in:
        w0 = jnp.pad(w0, ((0, 0), (0, c_in_p - C_in)))     # zero cols: exact
    kparams.append((w0.astype(compute_dtype), b0.astype(jnp.float32).reshape(-1, 1)))
    for w, b in params[1:-1]:
        kparams.append((w.astype(compute_dtype), b.astype(jnp.float32).reshape(-1, 1)))
    kparams.append((w_fold.astype(compute_dtype), b_fold))
    n_layers = len(kparams)

    # ---- tiling: length tile (cap 4096) + batch rows per step ---------------
    if tl is None:
        tl = 128 * _largest_divisor_leq(l_pad // 128, 4096 // 128)
    assert l_pad % tl == 0 and tl % 128 == 0
    nb = _largest_divisor_leq(N, max(1, target_positions // tl))
    if l_pad // tl == 1 and N >= 2 and nb == N:
        # Keep >= 2 grid steps so work shards across v7x's two TensorCores.
        nb = _largest_divisor_leq(N, N // 2)
    grid = (N // nb, l_pad // tl)

    # ---- specs ---------------------------------------------------------------
    in_specs = [pl.BlockSpec((nb, c_in_p, tl), lambda n, l: (n, 0, l))]
    args = [x_c]
    for w, b in kparams:
        in_specs.append(pl.BlockSpec(w.shape, lambda n, l: (0, 0)))
        in_specs.append(pl.BlockSpec(b.shape, lambda n, l: (0, 0)))
        args.append(w)
        args.append(b)

    out_specs = pl.BlockSpec((nb, 1, tl), lambda n, l: (n, 0, l))
    out_shape = jax.ShapeDtypeStruct((N, 1, l_pad), jnp.float32)

    # ---- advisory cost estimate ---------------------------------------------
    dims = [c_in_p] + [w.shape[0] for w, _ in kparams]
    flops = 2 * N * l_pad * sum(dims[i] * dims[i + 1] for i in range(len(dims) - 1))
    bytes_accessed = (x_c.size * x_c.dtype.itemsize
                      + sum(a.size * a.dtype.itemsize for a in args[1:])
                      + N * l_pad * 4)

    out = pl.pallas_call(
        _make_kernel(n_layers, nb, compute_dtype),
        out_shape=out_shape,
        grid=grid,
        in_specs=in_specs,
        out_specs=out_specs,
        compiler_params=pltpu.CompilerParams(
            dimension_semantics=("parallel", "parallel")),
        cost_estimate=pl.CostEstimate(flops=int(flops), transcendentals=0,
                                      bytes_accessed=int(bytes_accessed)),
    )(*args)

    return out.reshape(N, l_pad)[:, :L]


# ---------------------- Deterministic parameter init -------------------------
def init_params(key, input_channels,
                filters=(64, 64, 128, 128, 128), out_channels=128):
    """PyTorch-Conv1d-like uniform init. W stored as (C_out, C_in)."""
    dims = [input_channels] + list(filters) + [out_channels]
    params = []
    for i in range(len(dims) - 1):
        c_in, c_out = dims[i], dims[i + 1]
        key, kw, kb = jax.random.split(key, 3)
        bound = 1.0 / (c_in ** 0.5)        # kernel_size = 1
        w = jax.random.uniform(kw, (c_out, c_in), jnp.float32, -bound, bound)
        b = jax.random.uniform(kb, (c_out,), jnp.float32, -bound, bound)
        params.append((w, b))
    return params


# --------------------------- Pure-JAX reference -------------------------------
def reference_forward(x_ncl, params):
    """f32 reference mirroring the PyTorch module exactly (no mean fold)."""
    h = x_ncl
    n = len(params)
    for i, (w, b) in enumerate(params):
        h = jnp.einsum('oc,ncl->nol', w, h) + b[None, :, None]
        if i < n - 1:                      # ReLU on the 5 hidden layers only
            h = jnp.maximum(h, 0.0)
    return jnp.mean(h, axis=1)             # (N, L)


if __name__ == "__main__":
    # Small shapes: batch=2, input channels=4, sequence length=16.
    key = jax.random.PRNGKey(0)
    k_x, k_p = jax.random.split(key)

    N, C_in, L = 2, 4, 16
    x = jax.random.normal(k_x, (N, C_in, L), dtype=jnp.float32)
    params = init_params(k_p, C_in)

    ref = reference_forward(x, params)

    # f32 path: tight structural check (mean-fold, padding, layout are exact rewrites).
    out_f32 = jax.block_until_ready(
        fcn_array_forward(x, params, compute_dtype=jnp.float32))
    assert out_f32.shape == (N, L)
    assert jnp.allclose(out_f32, ref, atol=1e-3, rtol=1e-3), "f32 mismatch"

    # bf16-input / f32-accumulate path (default perf path): looser tolerance.
    out_bf16 = jax.block_until_ready(fcn_array_forward(x, params))
    assert out_bf16.shape == (N, L)
    assert jnp.allclose(out_bf16, ref, atol=2e-2, rtol=5e-2), "bf16 mismatch"

    print("KERNEL_OK")
</pallas_src>

<mosaic_0001>
module attributes {stable_mosaic.version = 11 : i64} {
  func.func @kernel(%arg0: i32, %arg1: i32, %arg2: memref<1x8x128xf32, #tpu.memory_space<vmem>>, %arg3: memref<64x8xf32, #tpu.memory_space<vmem>>, %arg4: memref<64x1xf32, #tpu.memory_space<vmem>>, %arg5: memref<64x64xf32, #tpu.memory_space<vmem>>, %arg6: memref<64x1xf32, #tpu.memory_space<vmem>>, %arg7: memref<128x64xf32, #tpu.memory_space<vmem>>, %arg8: memref<128x1xf32, #tpu.memory_space<vmem>>, %arg9: memref<128x128xf32, #tpu.memory_space<vmem>>, %arg10: memref<128x1xf32, #tpu.memory_space<vmem>>, %arg11: memref<128x128xf32, #tpu.memory_space<vmem>>, %arg12: memref<128x1xf32, #tpu.memory_space<vmem>>, %arg13: memref<1x128xf32, #tpu.memory_space<vmem>>, %arg14: memref<1x1xf32, #tpu.memory_space<vmem>>, %arg15: memref<1x1x128xf32, #tpu.memory_space<vmem>>) attributes {dimension_semantics = [#tpu.dimension_semantics<parallel>, #tpu.dimension_semantics<parallel>], iteration_bounds = array<i64: 2, 1>, scalar_prefetch = 0 : i64, scratch_operands = 0 : i64, tpu.core_type = #tpu.core_type<tc>, window_params = [{transform_indices = @transform_0, window_bounds = array<i64: 1, 8, 128>}, {pipeline_mode = #tpu.pipeline_mode<synchronous>, transform_indices = @transform_1, window_bounds = array<i64: 64, 8>}, {pipeline_mode = #tpu.pipeline_mode<synchronous>, transform_indices = @transform_2, window_bounds = array<i64: 64, 1>}, {pipeline_mode = #tpu.pipeline_mode<synchronous>, transform_indices = @transform_3, window_bounds = array<i64: 64, 64>}, {pipeline_mode = #tpu.pipeline_mode<synchronous>, transform_indices = @transform_4, window_bounds = array<i64: 64, 1>}, {pipeline_mode = #tpu.pipeline_mode<synchronous>, transform_indices = @transform_5, window_bounds = array<i64: 128, 64>}, {pipeline_mode = #tpu.pipeline_mode<synchronous>, transform_indices = @transform_6, window_bounds = array<i64: 128, 1>}, {pipeline_mode = #tpu.pipeline_mode<synchronous>, transform_indices = @transform_7, window_bounds = array<i64: 128, 128>}, {pipeline_mode = #tpu.pipeline_mode<synchronous>, transform_indices = @transform_8, window_bounds = array<i64: 128, 1>}, {pipeline_mode = #tpu.pipeline_mode<synchronous>, transform_indices = @transform_9, window_bounds = array<i64: 128, 128>}, {pipeline_mode = #tpu.pipeline_mode<synchronous>, transform_indices = @transform_10, window_bounds = array<i64: 128, 1>}, {pipeline_mode = #tpu.pipeline_mode<synchronous>, transform_indices = @transform_11, window_bounds = array<i64: 1, 128>}, {pipeline_mode = #tpu.pipeline_mode<synchronous>, transform_indices = @transform_12, window_bounds = array<i64: 1, 1>}, {transform_indices = @transform_13, window_bounds = array<i64: 1, 1, 128>}]} {
    %c0_i32 = arith.constant 0 : i32
    %0 = arith.index_cast %c0_i32 : i32 to index
    %c0 = arith.constant 0 : index
    %c0_0 = arith.constant 0 : index
    %1 = vector.load %arg2[%0, %c0, %c0_0] : memref<1x8x128xf32, #tpu.memory_space<vmem>>, vector<1x8x128xf32>
    %2 = vector.shape_cast %1 : vector<1x8x128xf32> to vector<8x128xf32>
    %c0_1 = arith.constant 0 : index
    %c0_2 = arith.constant 0 : index
    %3 = vector.load %arg3[%c0_1, %c0_2] : memref<64x8xf32, #tpu.memory_space<vmem>>, vector<64x8xf32>
    %c0_3 = arith.constant 0 : index
    %c0_4 = arith.constant 0 : index
    %4 = vector.load %arg4[%c0_3, %c0_4] : memref<64x1xf32, #tpu.memory_space<vmem>>, vector<64x1xf32>
    %cst = arith.constant dense<0.000000e+00> : vector<64x128xf32>
    %5 = tpu.matmul %3, %2, %cst {dimension_numbers = #tpu.dot_dimension_numbers<[1], [0], [0], [1], [0, 0, 1, 1], [], []>} : vector<64x8xf32>, vector<8x128xf32>, vector<64x128xf32> -> vector<64x128xf32>
    %6 = vector.broadcast %4 : vector<64x1xf32> to vector<64x128xf32>
    %7 = arith.addf %5, %6 : vector<64x128xf32>
    %cst_5 = arith.constant 0.000000e+00 : f32
    %8 = vector.broadcast %cst_5 : f32 to vector<64x128xf32>
    %9 = arith.maximumf %7, %8 : vector<64x128xf32>
    %c0_6 = arith.constant 0 : index
    %c0_7 = arith.constant 0 : index
    %10 = vector.load %arg5[%c0_6, %c0_7] : memref<64x64xf32, #tpu.memory_space<vmem>>, vector<64x64xf32>
    %c0_8 = arith.constant 0 : index
    %c0_9 = arith.constant 0 : index
    %11 = vector.load %arg6[%c0_8, %c0_9] : memref<64x1xf32, #tpu.memory_space<vmem>>, vector<64x1xf32>
    %cst_10 = arith.constant dense<0.000000e+00> : vector<64x128xf32>
    %12 = tpu.matmul %10, %9, %cst_10 {dimension_numbers = #tpu.dot_dimension_numbers<[1], [0], [0], [1], [0, 0, 1, 1], [], []>} : vector<64x64xf32>, vector<64x128xf32>, vector<64x128xf32> -> vector<64x128xf32>
    %13 = vector.broadcast %11 : vector<64x1xf32> to vector<64x128xf32>
    %14 = arith.addf %12, %13 : vector<64x128xf32>
    %cst_11 = arith.constant 0.000000e+00 : f32
    %15 = vector.broadcast %cst_11 : f32 to vector<64x128xf32>
    %16 = arith.maximumf %14, %15 : vector<64x128xf32>
    %c0_12 = arith.constant 0 : index
    %c0_13 = arith.constant 0 : index
    %17 = vector.load %arg7[%c0_12, %c0_13] : memref<128x64xf32, #tpu.memory_space<vmem>>, vector<128x64xf32>
    %c0_14 = arith.constant 0 : index
    %c0_15 = arith.constant 0 : index
    %18 = vector.load %arg8[%c0_14, %c0_15] : memref<128x1xf32, #tpu.memory_space<vmem>>, vector<128x1xf32>
    %cst_16 = arith.constant dense<0.000000e+00> : vector<128x128xf32>
    %19 = tpu.matmul %17, %16, %cst_16 {dimension_numbers = #tpu.dot_dimension_numbers<[1], [0], [0], [1], [0, 0, 1, 1], [], []>} : vector<128x64xf32>, vector<64x128xf32>, vector<128x128xf32> -> vector<128x128xf32>
    %20 = vector.broadcast %18 : vector<128x1xf32> to vector<128x128xf32>
    %21 = arith.addf %19, %20 : vector<128x128xf32>
    %cst_17 = arith.constant 0.000000e+00 : f32
    %22 = vector.broadcast %cst_17 : f32 to vector<128x128xf32>
    %23 = arith.maximumf %21, %22 : vector<128x128xf32>
    %c0_18 = arith.constant 0 : index
    %c0_19 = arith.constant 0 : index
    %24 = vector.load %arg9[%c0_18, %c0_19] : memref<128x128xf32, #tpu.memory_space<vmem>>, vector<128x128xf32>
    %c0_20 = arith.constant 0 : index
    %c0_21 = arith.constant 0 : index
    %25 = vector.load %arg10[%c0_20, %c0_21] : memref<128x1xf32, #tpu.memory_space<vmem>>, vector<128x1xf32>
    %cst_22 = arith.constant dense<0.000000e+00> : vector<128x128xf32>
    %26 = tpu.matmul %24, %23, %cst_22 {dimension_numbers = #tpu.dot_dimension_numbers<[1], [0], [0], [1], [0, 0, 1, 1], [], []>} : vector<128x128xf32>, vector<128x128xf32>, vector<128x128xf32> -> vector<128x128xf32>
    %27 = vector.broadcast %25 : vector<128x1xf32> to vector<128x128xf32>
    %28 = arith.addf %26, %27 : vector<128x128xf32>
    %cst_23 = arith.constant 0.000000e+00 : f32
    %29 = vector.broadcast %cst_23 : f32 to vector<128x128xf32>
    %30 = arith.maximumf %28, %29 : vector<128x128xf32>
    %c0_24 = arith.constant 0 : index
    %c0_25 = arith.constant 0 : index
    %31 = vector.load %arg11[%c0_24, %c0_25] : memref<128x128xf32, #tpu.memory_space<vmem>>, vector<128x128xf32>
    %c0_26 = arith.constant 0 : index
    %c0_27 = arith.constant 0 : index
    %32 = vector.load %arg12[%c0_26, %c0_27] : memref<128x1xf32, #tpu.memory_space<vmem>>, vector<128x1xf32>
    %cst_28 = arith.constant dense<0.000000e+00> : vector<128x128xf32>
    %33 = tpu.matmul %31, %30, %cst_28 {dimension_numbers = #tpu.dot_dimension_numbers<[1], [0], [0], [1], [0, 0, 1, 1], [], []>} : vector<128x128xf32>, vector<128x128xf32>, vector<128x128xf32> -> vector<128x128xf32>
    %34 = vector.broadcast %32 : vector<128x1xf32> to vector<128x128xf32>
    %35 = arith.addf %33, %34 : vector<128x128xf32>
    %cst_29 = arith.constant 0.000000e+00 : f32
    %36 = vector.broadcast %cst_29 : f32 to vector<128x128xf32>
    %37 = arith.maximumf %35, %36 : vector<128x128xf32>
    %c0_30 = arith.constant 0 : index
    %c0_31 = arith.constant 0 : index
    %38 = vector.load %arg13[%c0_30, %c0_31] : memref<1x128xf32, #tpu.memory_space<vmem>>, vector<1x128xf32>
    %c0_32 = arith.constant 0 : index
    %c0_33 = arith.constant 0 : index
    %39 = vector.load %arg14[%c0_32, %c0_33] : memref<1x1xf32, #tpu.memory_space<vmem>>, vector<1x1xf32>
    %cst_34 = arith.constant dense<0.000000e+00> : vector<1x128xf32>
    %40 = tpu.matmul %38, %37, %cst_34 {dimension_numbers = #tpu.dot_dimension_numbers<[1], [0], [0], [1], [0, 0, 1, 1], [], []>} : vector<1x128xf32>, vector<128x128xf32>, vector<1x128xf32> -> vector<1x128xf32>
    %41 = vector.broadcast %39 : vector<1x1xf32> to vector<1x128xf32>
    %42 = arith.addf %40, %41 : vector<1x128xf32>
    %43 = arith.index_cast %c0_i32 : i32 to index
    %c0_35 = arith.constant 0 : index
    %c0_36 = arith.constant 0 : index
    %44 = vector.load %arg15[%43, %c0_35, %c0_36] : memref<1x1x128xf32, #tpu.memory_space<vmem>>, vector<1x1x128xf32>
    %45 = vector.shape_cast %44 : vector<1x1x128xf32> to vector<1x128xf32>
    %46 = vector.shape_cast %42 : vector<1x128xf32> to vector<1x1x128xf32>
    tpu.vector_store %arg15[%43, %c0_35, %c0_36], %46 {strides = array<i32>} : memref<1x1x128xf32, #tpu.memory_space<vmem>>, vector<1x1x128xf32>,
    %c1_i32 = arith.constant 1 : i32
    return
  }
  func.func @transform_0(%arg0: i32, %arg1: i32) -> (i32, i32, i32) {
    %c0_i32 = arith.constant 0 : i32
    %c0_i32_0 = arith.constant 0 : i32
    return %arg0, %c0_i32, %arg1 : i32, i32, i32
  }
  func.func @transform_1(%arg0: i32, %arg1: i32) -> (i32, i32) {
    %c0_i32 = arith.constant 0 : i32
    %c0_i32_0 = arith.constant 0 : i32
    %c0_i32_1 = arith.constant 0 : i32
    return %c0_i32, %c0_i32_0 : i32, i32
  }
  func.func @transform_2(%arg0: i32, %arg1: i32) -> (i32, i32) {
    %c0_i32 = arith.constant 0 : i32
    %c0_i32_0 = arith.constant 0 : i32
    %c0_i32_1 = arith.constant 0 : i32
    return %c0_i32, %c0_i32_0 : i32, i32
  }
  func.func @transform_3(%arg0: i32, %arg1: i32) -> (i32, i32) {
    %c0_i32 = arith.constant 0 : i32
    %c0_i32_0 = arith.constant 0 : i32
    %c0_i32_1 = arith.constant 0 : i32
    return %c0_i32, %c0_i32_0 : i32, i32
  }
  func.func @transform_4(%arg0: i32, %arg1: i32) -> (i32, i32) {
    %c0_i32 = arith.constant 0 : i32
    %c0_i32_0 = arith.constant 0 : i32
    %c0_i32_1 = arith.constant 0 : i32
    return %c0_i32, %c0_i32_0 : i32, i32
  }
  func.func @transform_5(%arg0: i32, %arg1: i32) -> (i32, i32) {
    %c0_i32 = arith.constant 0 : i32
    %c0_i32_0 = arith.constant 0 : i32
    %c0_i32_1 = arith.constant 0 : i32
    return %c0_i32, %c0_i32_0 : i32, i32
  }
  func.func @transform_6(%arg0: i32, %arg1: i32) -> (i32, i32) {
    %c0_i32 = arith.constant 0 : i32
    %c0_i32_0 = arith.constant 0 : i32
    %c0_i32_1 = arith.constant 0 : i32
    return %c0_i32, %c0_i32_0 : i32, i32
  }
  func.func @transform_7(%arg0: i32, %arg1: i32) -> (i32, i32) {
    %c0_i32 = arith.constant 0 : i32
    %c0_i32_0 = arith.constant 0 : i32
    %c0_i32_1 = arith.constant 0 : i32
    return %c0_i32, %c0_i32_0 : i32, i32
  }
  func.func @transform_8(%arg0: i32, %arg1: i32) -> (i32, i32) {
    %c0_i32 = arith.constant 0 : i32
    %c0_i32_0 = arith.constant 0 : i32
    %c0_i32_1 = arith.constant 0 : i32
    return %c0_i32, %c0_i32_0 : i32, i32
  }
  func.func @transform_9(%arg0: i32, %arg1: i32) -> (i32, i32) {
    %c0_i32 = arith.constant 0 : i32
    %c0_i32_0 = arith.constant 0 : i32
    %c0_i32_1 = arith.constant 0 : i32
    return %c0_i32, %c0_i32_0 : i32, i32
  }
  func.func @transform_10(%arg0: i32, %arg1: i32) -> (i32, i32) {
    %c0_i32 = arith.constant 0 : i32
    %c0_i32_0 = arith.constant 0 : i32
    %c0_i32_1 = arith.constant 0 : i32
    return %c0_i32, %c0_i32_0 : i32, i32
  }
  func.func @transform_11(%arg0: i32, %arg1: i32) -> (i32, i32) {
    %c0_i32 = arith.constant 0 : i32
    %c0_i32_0 = arith.constant 0 : i32
    %c0_i32_1 = arith.constant 0 : i32
    return %c0_i32, %c0_i32_0 : i32, i32
  }
  func.func @transform_12(%arg0: i32, %arg1: i32) -> (i32, i32) {
    %c0_i32 = arith.constant 0 : i32
    %c0_i32_0 = arith.constant 0 : i32
    %c0_i32_1 = arith.constant 0 : i32
    return %c0_i32, %c0_i32_0 : i32, i32
  }
  func.func @transform_13(%arg0: i32, %arg1: i32) -> (i32, i32, i32) {
    %c0_i32 = arith.constant 0 : i32
    %c0_i32_0 = arith.constant 0 : i32
    return %arg0, %c0_i32, %arg1 : i32, i32, i32
  }
}

</mosaic_0001>

<llo_original>
// kernel: tpu_custom_call.1
$region0: #{tpu_custom_call.1}
  #allocation0 [shape = 'u32[]', space=smem, size = 0x4, offset = 0x4, fixed_abs, tag = 'smem constant byte address 0x4 - core index']
  #allocation1 [shape = 'u32[144,128]{1,0:T(1,128)}', space=vmem, size = 0x12000, scoped, tag = 'internal scratch']
  #allocation2 [shape = 'f32[1,1]{1,0:T(1,128)S(1)}', space=vmem, size = 0x200, scoped, tag = 'scoped memory for tpu_custom_call.1']
  %s0 = inlined_call_operand.vmem [shape: f32[2,8,128], index: 0, kind: input, shape index: {}]
  %s1 = inlined_call_operand.vmem [shape: f32[64,8], index: 1, kind: input, shape index: {}]
  %s2 = inlined_call_operand.vmem [shape: f32[64,1], index: 2, kind: input, shape index: {}]
  %s3 = inlined_call_operand.vmem [shape: f32[64,64], index: 3, kind: input, shape index: {}]
  %s4 = inlined_call_operand.vmem [shape: f32[64,1], index: 4, kind: input, shape index: {}]
  %s5 = inlined_call_operand.vmem [shape: f32[128,64], index: 5, kind: input, shape index: {}]
  %s6 = inlined_call_operand.vmem [shape: f32[128,1], index: 6, kind: input, shape index: {}]
  %s7 = inlined_call_operand.vmem [shape: f32[128,128], index: 7, kind: input, shape index: {}]
  %s8 = inlined_call_operand.vmem [shape: f32[128,1], index: 8, kind: input, shape index: {}]
  %s9 = inlined_call_operand.vmem [shape: f32[128,128], index: 9, kind: input, shape index: {}]
  %s10 = inlined_call_operand.vmem [shape: f32[128,1], index: 10, kind: input, shape index: {}]
  %s11 = inlined_call_operand.vmem [shape: f32[1,128], index: 11, kind: input, shape index: {}]
  %s12 = inlined_call_operand.<no memory space> [shape: f32[1,1], index: 12, kind: input, shape index: {}]
  %s13 = inlined_call_operand.hbm [shape: f32[2,1,128], index: 13, kind: output, shape index: {}]
  %s14 = sld [smem:[#allocation0]]
  $region85: #{tpu_custom_call.1} parent=0
    _
  %s16 = ssub.s32 1, %s14
  %s17 = scalar_select 0, %s16, %s14
  %v18 = vstv %s12
  %19 = vst [vmem:[#allocation2] sm:$0x1] %v18
  $region1: #{tpu_custom_call.1} parent=0
    #allocation3 [shape = 'u8[1024]{0}', space=vmem, size = 0x400, scoped, tag = 'output window, operand 0']
    #allocation4 [shape = 's32[2]{0}', space=sflag, size = 0x8, scoped, tag = 'scoped memory for tpu_custom_call.1']
    %20 = vsyncpa [#allocation4], 0
    %s21 = scalar_lea.sflag [#allocation4], 1
    %22 = vsyncpa %s21, 0
    loop: start=0, step=1, limit=4
    $region2: #{tpu_custom_call.1} parent=1 // loop_pre_header
      _
    $region3: #{tpu_custom_call.1} parent=1 // loop_header
      %s24 = sphi 0, %s28
      %p25 = scmp.ge.s32.totalorder %s24, 4
      %s31 = sphi 0, %s43
      %s32 = sphi 0, %s39
      %s33 = sphi 0, %s31
      %s34 = sphi 0, %s32
      %s35 = sphi 0, %s33
      %s36 = sphi 0, %s34
      %s48 = sphi 0, %s50
      %s51 = sphi 0, %s48
      %s52 = sphi 0, %s51
      %s68 = sphi 0, %s52
      %s72 = sphi 0, %s72
      %s74 = sphi 0, %s72
      %s75 = sphi 0, %s74
      %s89 = sphi 0, %s75
      %s93 = sphi 0, %s93
      %s95 = sphi 0, %s93
      %s96 = sphi 0, %s95
      %s110 = sphi 0, %s96
      %s114 = sphi 0, %s114
      %s116 = sphi 0, %s114
      %s117 = sphi 0, %s116
      %s131 = sphi 0, %s117
      %s135 = sphi 0, %s135
      %s137 = sphi 0, %s135
      %s138 = sphi 0, %s137
      %s152 = sphi 0, %s138
      %s156 = sphi 0, %s156
      %s158 = sphi 0, %s156
      %s159 = sphi 0, %s158
      %s173 = sphi 0, %s159
      %s177 = sphi 0, %s177
      %s179 = sphi 0, %s177
      %s180 = sphi 0, %s179
      %s194 = sphi 0, %s180
      %s198 = sphi 0, %s198
      %s200 = sphi 0, %s198
      %s201 = sphi 0, %s200
      %s215 = sphi 0, %s201
      %s219 = sphi 0, %s219
      %s221 = sphi 0, %s219
      %s222 = sphi 0, %s221
      %s236 = sphi 0, %s222
      %s240 = sphi 0, %s240
      %s242 = sphi 0, %s240
      %s243 = sphi 0, %s242
      %s257 = sphi 0, %s243
      %s261 = sphi 0, %s261
      %s263 = sphi 0, %s261
      %s264 = sphi 0, %s263
      %s278 = sphi 0, %s264
      %s282 = sphi 0, %s282
      %s284 = sphi 0, %s282
      %s285 = sphi 0, %s284
      %s299 = sphi 0, %s285
      %s303 = sphi 0, %s303
      %s305 = sphi 0, %s303
      %s306 = sphi 0, %s305
      %s320 = sphi 0, %s306
      %s328 = sphi 0, %s330
      %s331 = sphi 0, %s328
      %s332 = sphi 0, %s331
      %s348 = sphi 0, %s332
    $region4: #{tpu_custom_call.1} parent=1 // loop_header_branch
      %27 = sbr.rel (%p25) target = $region8
    $region5: #{tpu_custom_call.1} parent=1 // loop_body
      %s29 = ssub.s32 %s24, 1
      %s30 = ssub.s32 %s24, 2
      %s37 = sadd.s32 1, %s32
      %p38 = scmp.ge.s32.totalorder %s37, 1
      %s39 = scalar_select %p38, 0, %s37
      %s40 = sadd.s32 1, %s31
      %s41 = scalar_select %p38, %s40, %s31
      %p42 = scmp.ge.s32.totalorder %s41, 2
      %s43 = scalar_select %p42, 0, %s41
      %s44 = ssub.s32 %s31, %s43
      %s45 = ssub.s32 %s32, %s39
      %s46 = sor.u32 %s44, %s45
      %p47 = scmp.eq.s32.totalorder %s46, 0
      %s49 = sadd.s32 %s48, 1
      %s50 = scalar_select %p47, %s48, %s49
      %p53 = pneg %p47
      %p54 = scmp.eq.s32.totalorder %s24, 1
      %p55 = por %p53, %p54
      %p56 = scmp.ne.s32.totalorder %s48, %s51
      %p57 = scmp.eq.s32.totalorder %s24, 0
      %p58 = por %p56, %p57
      %p59 = scmp.ne.s32.totalorder %s48, %s51
      %p60 = scmp.eq.s32.totalorder %s29, 1
      %p61 = por %p59, %p60
      %p62 = scmp.ne.s32.totalorder %s51, %s52
      %p63 = scmp.eq.s32.totalorder %s29, 0
      %p64 = por %p62, %p63
      %p65 = scmp.ne.s32.totalorder %s51, %s52
      %p66 = scmp.eq.s32.totalorder %s30, 1
      %p67 = por %p65, %p66
      %p69 = scmp.ne.s32.totalorder %s52, %s68
      %p70 = scmp.eq.s32.totalorder %s30, 0
      %p71 = por %p69, %p70
      %s73 = sadd.s32 %s72, 1
      %p76 = scmp.eq.s32.totalorder %s24, 1
      %p77 = scmp.ne.s32.totalorder %s72, %s74
      %p78 = scmp.eq.s32.totalorder %s24, 0
      %p79 = por %p77, %p78
      %p80 = scmp.ne.s32.totalorder %s72, %s74
      %p81 = scmp.eq.s32.totalorder %s29, 1
      %p82 = por %p80, %p81
      %p83 = scmp.ne.s32.totalorder %s74, %s75
      %p84 = scmp.eq.s32.totalorder %s29, 0
      %p85 = por %p83, %p84
      %p86 = scmp.ne.s32.totalorder %s74, %s75
      %p87 = scmp.eq.s32.totalorder %s30, 1
      %p88 = por %p86, %p87
      %p90 = scmp.ne.s32.totalorder %s75, %s89
      %p91 = scmp.eq.s32.totalorder %s30, 0
      %p92 = por %p90, %p91
      %s94 = sadd.s32 %s93, 1
      %p97 = scmp.eq.s32.totalorder %s24, 1
      %p98 = scmp.ne.s32.totalorder %s93, %s95
      %p99 = scmp.eq.s32.totalorder %s24, 0
      %p100 = por %p98, %p99
      %p101 = scmp.ne.s32.totalorder %s93, %s95
      %p102 = scmp.eq.s32.totalorder %s29, 1
      %p103 = por %p101, %p102
      %p104 = scmp.ne.s32.totalorder %s95, %s96
      %p105 = scmp.eq.s32.totalorder %s29, 0
      %p106 = por %p104, %p105
      %p107 = scmp.ne.s32.totalorder %s95, %s96
      %p108 = scmp.eq.s32.totalorder %s30, 1
      %p109 = por %p107, %p108
      %p111 = scmp.ne.s32.totalorder %s96, %s110
      %p112 = scmp.eq.s32.totalorder %s30, 0
      %p113 = por %p111, %p112
      %s115 = sadd.s32 %s114, 1
      %p118 = scmp.eq.s32.totalorder %s24, 1
      %p119 = scmp.ne.s32.totalorder %s114, %s116
      %p120 = scmp.eq.s32.totalorder %s24, 0
      %p121 = por %p119, %p120
      %p122 = scmp.ne.s32.totalorder %s114, %s116
      %p123 = scmp.eq.s32.totalorder %s29, 1
      %p124 = por %p122, %p123
      %p125 = scmp.ne.s32.totalorder %s116, %s117
      %p126 = scmp.eq.s32.totalorder %s29, 0
      %p127 = por %p125, %p126
      %p128 = scmp.ne.s32.totalorder %s116, %s117
      %p129 = scmp.eq.s32.totalorder %s30, 1
      %p130 = por %p128, %p129
      %p132 = scmp.ne.s32.totalorder %s117, %s131
      %p133 = scmp.eq.s32.totalorder %s30, 0
      %p134 = por %p132, %p133
      %s136 = sadd.s32 %s135, 1
      %p139 = scmp.eq.s32.totalorder %s24, 1
      %p140 = scmp.ne.s32.totalorder %s135, %s137
      %p141 = scmp.eq.s32.totalorder %s24, 0
      %p142 = por %p140, %p141
      %p143 = scmp.ne.s32.totalorder %s135, %s137
      %p144 = scmp.eq.s32.totalorder %s29, 1
      %p145 = por %p143, %p144
      %p146 = scmp.ne.s32.totalorder %s137, %s138
      %p147 = scmp.eq.s32.totalorder %s29, 0
      %p148 = por %p146, %p147
      %p149 = scmp.ne.s32.totalorder %s137, %s138
      %p150 = scmp.eq.s32.totalorder %s30, 1
      %p151 = por %p149, %p150
      %p153 = scmp.ne.s32.totalorder %s138, %s152
      %p154 = scmp.eq.s32.totalorder %s30, 0
      %p155 = por %p153, %p154
      %s157 = sadd.s32 %s156, 1
      %p160 = scmp.eq.s32.totalorder %s24, 1
      %p161 = scmp.ne.s32.totalorder %s156, %s158
      %p162 = scmp.eq.s32.totalorder %s24, 0
      %p163 = por %p161, %p162
      %p164 = scmp.ne.s32.totalorder %s156, %s158
      %p165 = scmp.eq.s32.totalorder %s29, 1
      %p166 = por %p164, %p165
      %p167 = scmp.ne.s32.totalorder %s158, %s159
      %p168 = scmp.eq.s32.totalorder %s29, 0
      %p169 = por %p167, %p168
      %p170 = scmp.ne.s32.totalorder %s158, %s159
      %p171 = scmp.eq.s32.totalorder %s30, 1
      %p172 = por %p170, %p171
      %p174 = scmp.ne.s32.totalorder %s159, %s173
      %p175 = scmp.eq.s32.totalorder %s30, 0
      %p176 = por %p174, %p175
      %s178 = sadd.s32 %s177, 1
      %p181 = scmp.eq.s32.totalorder %s24, 1
      %p182 = scmp.ne.s32.totalorder %s177, %s179
      %p183 = scmp.eq.s32.totalorder %s24, 0
      %p184 = por %p182, %p183
      %p185 = scmp.ne.s32.totalorder %s177, %s179
      %p186 = scmp.eq.s32.totalorder %s29, 1
      %p187 = por %p185, %p186
      %p188 = scmp.ne.s32.totalorder %s179, %s180
      %p189 = scmp.eq.s32.totalorder %s29, 0
      %p190 = por %p188, %p189
      %p191 = scmp.ne.s32.totalorder %s179, %s180
      %p192 = scmp.eq.s32.totalorder %s30, 1
      %p193 = por %p191, %p192
      %p195 = scmp.ne.s32.totalorder %s180, %s194
      %p196 = scmp.eq.s32.totalorder %s30, 0
      %p197 = por %p195, %p196
      %s199 = sadd.s32 %s198, 1
      %p202 = scmp.eq.s32.totalorder %s24, 1
      %p203 = scmp.ne.s32.totalorder %s198, %s200
      %p204 = scmp.eq.s32.totalorder %s24, 0
      %p205 = por %p203, %p204
      %p206 = scmp.ne.s32.totalorder %s198, %s200
      %p207 = scmp.eq.s32.totalorder %s29, 1
      %p208 = por %p206, %p207
      %p209 = scmp.ne.s32.totalorder %s200, %s201
      %p210 = scmp.eq.s32.totalorder %s29, 0
      %p211 = por %p209, %p210
      %p212 = scmp.ne.s32.totalorder %s200, %s201
      %p213 = scmp.eq.s32.totalorder %s30, 1
      %p214 = por %p212, %p213
      %p216 = scmp.ne.s32.totalorder %s201, %s215
      %p217 = scmp.eq.s32.totalorder %s30, 0
      %p218 = por %p216, %p217
      %s220 = sadd.s32 %s219, 1
      %p223 = scmp.eq.s32.totalorder %s24, 1
      %p224 = scmp.ne.s32.totalorder %s219, %s221
      %p225 = scmp.eq.s32.totalorder %s24, 0
      %p226 = por %p224, %p225
      %p227 = scmp.ne.s32.totalorder %s219, %s221
      %p228 = scmp.eq.s32.totalorder %s29, 1
      %p229 = por %p227, %p228
      %p230 = scmp.ne.s32.totalorder %s221, %s222
      %p231 = scmp.eq.s32.totalorder %s29, 0
      %p232 = por %p230, %p231
      %p233 = scmp.ne.s32.totalorder %s221, %s222
      %p234 = scmp.eq.s32.totalorder %s30, 1
      %p235 = por %p233, %p234
      %p237 = scmp.ne.s32.totalorder %s222, %s236
      %p238 = scmp.eq.s32.totalorder %s30, 0
      %p239 = por %p237, %p238
      %s241 = sadd.s32 %s240, 1
      %p244 = scmp.eq.s32.totalorder %s24, 1
      %p245 = scmp.ne.s32.totalorder %s240, %s242
      %p246 = scmp.eq.s32.totalorder %s24, 0
      %p247 = por %p245, %p246
      %p248 = scmp.ne.s32.totalorder %s240, %s242
      %p249 = scmp.eq.s32.totalorder %s29, 1
      %p250 = por %p248, %p249
      %p251 = scmp.ne.s32.totalorder %s242, %s243
      %p252 = scmp.eq.s32.totalorder %s29, 0
      %p253 = por %p251, %p252
      %p254 = scmp.ne.s32.totalorder %s242, %s243
      %p255 = scmp.eq.s32.totalorder %s30, 1
      %p256 = por %p254, %p255
      %p258 = scmp.ne.s32.totalorder %s243, %s257
      %p259 = scmp.eq.s32.totalorder %s30, 0
      %p260 = por %p258, %p259
      %s262 = sadd.s32 %s261, 1
      %p265 = scmp.eq.s32.totalorder %s24, 1
      %p266 = scmp.ne.s32.totalorder %s261, %s263
      %p267 = scmp.eq.s32.totalorder %s24, 0
      %p268 = por %p266, %p267
      %p269 = scmp.ne.s32.totalorder %s261, %s263
      %p270 = scmp.eq.s32.totalorder %s29, 1
      %p271 = por %p269, %p270
      %p272 = scmp.ne.s32.totalorder %s263, %s264
      %p273 = scmp.eq.s32.totalorder %s29, 0
      %p274 = por %p272, %p273
      %p275 = scmp.ne.s32.totalorder %s263, %s264
      %p276 = scmp.eq.s32.totalorder %s30, 1
      %p277 = por %p275, %p276
      %p279 = scmp.ne.s32.totalorder %s264, %s278
      %p280 = scmp.eq.s32.totalorder %s30, 0
      %p281 = por %p279, %p280
      %s283 = sadd.s32 %s282, 1
      %p286 = scmp.eq.s32.totalorder %s24, 1
      %p287 = scmp.ne.s32.totalorder %s282, %s284
      %p288 = scmp.eq.s32.totalorder %s24, 0
      %p289 = por %p287, %p288
      %p290 = scmp.ne.s32.totalorder %s282, %s284
      %p291 = scmp.eq.s32.totalorder %s29, 1
      %p292 = por %p290, %p291
      %p293 = scmp.ne.s32.totalorder %s284, %s285
      %p294 = scmp.eq.s32.totalorder %s29, 0
      %p295 = por %p293, %p294
      %p296 = scmp.ne.s32.totalorder %s284, %s285
      %p297 = scmp.eq.s32.totalorder %s30, 1
      %p298 = por %p296, %p297
      %p300 = scmp.ne.s32.totalorder %s285, %s299
      %p301 = scmp.eq.s32.totalorder %s30, 0
      %p302 = por %p300, %p301
      %s304 = sadd.s32 %s303, 1
      %p307 = scmp.eq.s32.totalorder %s24, 1
      %p308 = scmp.ne.s32.totalorder %s303, %s305
      %p309 = scmp.eq.s32.totalorder %s24, 0
      %p310 = por %p308, %p309
      %p311 = scmp.ne.s32.totalorder %s303, %s305
      %p312 = scmp.eq.s32.totalorder %s29, 1
      %p313 = por %p311, %p312
      %p314 = scmp.ne.s32.totalorder %s305, %s306
      %p315 = scmp.eq.s32.totalorder %s29, 0
      %p316 = por %p314, %p315
      %p317 = scmp.ne.s32.totalorder %s305, %s306
      %p318 = scmp.eq.s32.totalorder %s30, 1
      %p319 = por %p317, %p318
      %p321 = scmp.ne.s32.totalorder %s306, %s320
      %p322 = scmp.eq.s32.totalorder %s30, 0
      %p323 = por %p321, %p322
      %s324 = ssub.s32 %s31, %s43
      %s325 = ssub.s32 %s32, %s39
      %s326 = sor.u32 %s324, %s325
      %p327 = scmp.eq.s32.totalorder %s326, 0
      %s329 = sadd.s32 %s328, 1
      %s330 = scalar_select %p327, %s328, %s329
      %p333 = pneg %p327
      %p334 = scmp.eq.s32.totalorder %s24, 1
      %p335 = por %p333, %p334
      %p336 = scmp.ne.s32.totalorder %s328, %s331
      %p337 = scmp.eq.s32.totalorder %s24, 0
      %p338 = por %p336, %p337
      %p339 = scmp.ne.s32.totalorder %s328, %s331
      %p340 = scmp.eq.s32.totalorder %s29, 1
      %p341 = por %p339, %p340
      %p342 = scmp.ne.s32.totalorder %s331, %s332
      %p343 = scmp.eq.s32.totalorder %s29, 0
      %p344 = por %p342, %p343
      %p345 = scmp.ne.s32.totalorder %s331, %s332
      %p346 = scmp.eq.s32.totalorder %s30, 1
      %p347 = por %p345, %p346
      %p349 = scmp.ne.s32.totalorder %s332, %s348
      %p350 = scmp.eq.s32.totalorder %s30, 0
      %p351 = por %p349, %p350
      %p352 = scmp.le.s32.totalorder 1, %s24
      %p353 = scmp.lt.s32.totalorder %s24, 3
      %p354 = pnand %p352, %p353
      %p355 = pneg %p354
      // Predicated region
      $region9: #{tpu_custom_call.1} parent=5 // pred_check
        _
      $region10: #{tpu_custom_call.1} parent=5 // pred_check_branch
        %357 = sbr.rel (%p354) target = $region12
      $region11: #{tpu_custom_call.1} parent=5 // pred_region
        %s358 = ssub.s32 %s24, 1
        // Predicated region
        $region13: #{tpu_custom_call.1} parent=11 // pred_check
          %p359 = pneg %p85
        $region14: #{tpu_custom_call.1} parent=11 // pred_check_branch
          %361 = sbr.rel (%p359) target = $region16
        $region15: #{tpu_custom_call.1} parent=11 // pred_region
          _
        $region16: #{tpu_custom_call.1} parent=11 // pred_fallthru
          _
        // Predicated region
        $region17: #{tpu_custom_call.1} parent=11 // pred_check
          %p362 = pneg %p106
        $region18: #{tpu_custom_call.1} parent=11 // pred_check_branch
          %364 = sbr.rel (%p362) target = $region20
        $region19: #{tpu_custom_call.1} parent=11 // pred_region
          _
        $region20: #{tpu_custom_call.1} parent=11 // pred_fallthru
          _
        // Predicated region
        $region21: #{tpu_custom_call.1} parent=11 // pred_check
          %p365 = pneg %p127
        $region22: #{tpu_custom_call.1} parent=11 // pred_check_branch
          %367 = sbr.rel (%p365) target = $region24
        $region23: #{tpu_custom_call.1} parent=11 // pred_region
          _
        $region24: #{tpu_custom_call.1} parent=11 // pred_fallthru
          _
        // Predicated region
        $region25: #{tpu_custom_call.1} parent=11 // pred_check
          %p368 = pneg %p148
        $region26: #{tpu_custom_call.1} parent=11 // pred_check_branch
          %370 = sbr.rel (%p368) target = $region28
        $region27: #{tpu_custom_call.1} parent=11 // pred_region
          _
        $region28: #{tpu_custom_call.1} parent=11 // pred_fallthru
          _
        // Predicated region
        $region29: #{tpu_custom_call.1} parent=11 // pred_check
          %p371 = pneg %p169
        $region30: #{tpu_custom_call.1} parent=11 // pred_check_branch
          %373 = sbr.rel (%p371) target = $region32
        $region31: #{tpu_custom_call.1} parent=11 // pred_region
          _
        $region32: #{tpu_custom_call.1} parent=11 // pred_fallthru
          _
        // Predicated region
        $region33: #{tpu_custom_call.1} parent=11 // pred_check
          %p374 = pneg %p190
        $region34: #{tpu_custom_call.1} parent=11 // pred_check_branch
          %376 = sbr.rel (%p374) target = $region36
        $region35: #{tpu_custom_call.1} parent=11 // pred_region
          _
        $region36: #{tpu_custom_call.1} parent=11 // pred_fallthru
          _
        // Predicated region
        $region37: #{tpu_custom_call.1} parent=11 // pred_check
          %p377 = pneg %p211
        $region38: #{tpu_custom_call.1} parent=11 // pred_check_branch
          %379 = sbr.rel (%p377) target = $region40
        $region39: #{tpu_custom_call.1} parent=11 // pred_region
          _
        $region40: #{tpu_custom_call.1} parent=11 // pred_fallthru
          _
        // Predicated region
        $region41: #{tpu_custom_call.1} parent=11 // pred_check
          %p380 = pneg %p232
        $region42: #{tpu_custom_call.1} parent=11 // pred_check_branch
          %382 = sbr.rel (%p380) target = $region44
        $region43: #{tpu_custom_call.1} parent=11 // pred_region
          _
        $region44: #{tpu_custom_call.1} parent=11 // pred_fallthru
          _
        // Predicated region
        $region45: #{tpu_custom_call.1} parent=11 // pred_check
          %p383 = pneg %p253
        $region46: #{tpu_custom_call.1} parent=11 // pred_check_branch
          %385 = sbr.rel (%p383) target = $region48
        $region47: #{tpu_custom_call.1} parent=11 // pred_region
          _
        $region48: #{tpu_custom_call.1} parent=11 // pred_fallthru
          _
        // Predicated region
        $region49: #{tpu_custom_call.1} parent=11 // pred_check
          %p386 = pneg %p274
        $region50: #{tpu_custom_call.1} parent=11 // pred_check_branch
          %388 = sbr.rel (%p386) target = $region52
        $region51: #{tpu_custom_call.1} parent=11 // pred_region
          _
        $region52: #{tpu_custom_call.1} parent=11 // pred_fallthru
          _
        // Predicated region
        $region53: #{tpu_custom_call.1} parent=11 // pred_check
          %p389 = pneg %p295
        $region54: #{tpu_custom_call.1} parent=11 // pred_check_branch
          %391 = sbr.rel (%p389) target = $region56
        $region55: #{tpu_custom_call.1} parent=11 // pred_region
          _
        $region56: #{tpu_custom_call.1} parent=11 // pred_fallthru
          _
        // Predicated region
        $region57: #{tpu_custom_call.1} parent=11 // pred_check
          %p392 = pneg %p316
        $region58: #{tpu_custom_call.1} parent=11 // pred_check_branch
          %394 = sbr.rel (%p392) target = $region60
        $region59: #{tpu_custom_call.1} parent=11 // pred_region
          _
        $region60: #{tpu_custom_call.1} parent=11 // pred_fallthru
          _
      $region12: #{tpu_custom_call.1} parent=5 // pred_fallthru
        _
      %p395 = scmp.lt.s32.totalorder %s24, 2
      // Predicated region
      $region61: #{tpu_custom_call.1} parent=5 // pred_check
        %p396 = pneg %p395
      $region62: #{tpu_custom_call.1} parent=5 // pred_check_branch
        %398 = sbr.rel (%p396) target = $region64
      $region63: #{tpu_custom_call.1} parent=5 // pred_region
        // Predicated region
        $region65: #{tpu_custom_call.1} parent=63 // pred_check
          %p399 = pneg %p58
        $region66: #{tpu_custom_call.1} parent=63 // pred_check_branch
          %401 = sbr.rel (%p399) target = $region68
        $region67: #{tpu_custom_call.1} parent=63 // pred_region
          %p402 = scmp.lt.s32.totalorder %s31, 1
          %s403 = scalar_select %p402, %s31, 1
          %p404 = scmp.lt.s32.totalorder %s32, 0
          %s405 = scalar_select %p404, %s32, 0
          %s406 = sadd.s32 %s405, %s403
          %s407 = smul.addr %s406, 8
          %s408 = scalar_lea.vmem %s0, %s407
        $region68: #{tpu_custom_call.1} parent=63 // pred_fallthru
          _
      $region64: #{tpu_custom_call.1} parent=5 // pred_fallthru
        _
      %p409 = scmp.le.s32.totalorder 1, %s24
      %p410 = scmp.lt.s32.totalorder %s24, 3
      %p411 = pnand %p409, %p410
      %p412 = pneg %p411
      // Predicated region
      $region69: #{tpu_custom_call.1} parent=5 // pred_check
        _
      $region70: #{tpu_custom_call.1} parent=5 // pred_check_branch
        %414 = sbr.rel (%p411) target = $region72
      $region71: #{tpu_custom_call.1} parent=5 // pred_region
        %s415 = ssub.s32 %s24, 1
        %p416 = scmp.lt.s32.totalorder %s33, 1
        %s417 = scalar_select %p416, %s33, 1
        %p418 = scmp.lt.s32.totalorder %s34, 0
        %s419 = scalar_select %p418, %s34, 0
        %s420 = sadd.s32 %s419, %s417
        %s421 = smul.addr %s420, 8
        %s422 = scalar_lea.vmem %s0, %s421
        %p423 = pneg %p64
        %p424 = pneg %p61
        %p425 = pneg %p85
        %p426 = pneg %p82
        %p427 = pneg %p106
        %p428 = pneg %p103
        %p429 = pneg %p127
        %p430 = pneg %p124
        %p431 = pneg %p148
        %p432 = pneg %p145
        %p433 = pneg %p169
        %p434 = pneg %p166
        %p435 = pneg %p190
        %p436 = pneg %p187
        %p437 = pneg %p211
        %p438 = pneg %p208
        %p439 = pneg %p232
        %p440 = pneg %p229
        %p441 = pneg %p253
        %p442 = pneg %p250
        %p443 = pneg %p274
        %p444 = pneg %p271
        %p445 = pneg %p295
        %p446 = pneg %p292
        %p447 = pneg %p316
        %p448 = pneg %p313
        %p449 = pneg %p344
        %p450 = pneg %p341
        %s451 = sand.u32 %s331, 1
        %s452 = scalar_lea.sflag [#allocation4], %s451
        %s453 = sand.u32 %s331, 1
        %s454 = scalar_lea.vmem [#allocation3], %s453
        %p455 = scmp.lt.s32.totalorder %s33, 1
        %s456 = scalar_select %p455, %s33, 1
        %p457 = scmp.lt.s32.totalorder %s34, 0
        %s458 = scalar_select %p457, %s34, 0
        %s459 = sadd.s32 %s458, %s456
        %s460 = smul.addr %s459, 8
        %s461 = scalar_lea.vmem %s0, %s460
        %v462 = vld [vmem:[%s461] sm:$0xff]
        %v463 = vld [vmem:[%s1] sm:$0xff]
        %v464 = vld [vmem:[%s1 + $0x8] sm:$0xff]
        %v465 = vld [vmem:[%s1 + $0x10] sm:$0xff]
        %v466 = vld [vmem:[%s1 + $0x18] sm:$0xff]
        %v467 = vld [vmem:[%s1 + $0x20] sm:$0xff]
        %v468 = vld [vmem:[%s1 + $0x28] sm:$0xff]
        %v469 = vld [vmem:[%s1 + $0x30] sm:$0xff]
        %v470 = vld [vmem:[%s1 + $0x38] sm:$0xff]
        %v471 = vld [vmem:[%s2] sm:$0xff]
        %v472 = vld [vmem:[%s2 + $0x8] sm:$0xff]
        %v473 = vld [vmem:[%s2 + $0x10] sm:$0xff]
        %v474 = vld [vmem:[%s2 + $0x18] sm:$0xff]
        %v475 = vld [vmem:[%s2 + $0x20] sm:$0xff]
        %v476 = vld [vmem:[%s2 + $0x28] sm:$0xff]
        %v477 = vld [vmem:[%s2 + $0x30] sm:$0xff]
        %v478 = vld [vmem:[%s2 + $0x38] sm:$0xff]
        %480 = vset.pattern.permute.xlu0 0
        %481 = vperm.xlu0 %480, %v471
        %v482 = vpop.permute.xlu0 %481
        %485 = vset.pattern.permute.xlu0 0
        %486 = vperm.xlu0 %485, %v472
        %v487 = vpop.permute.xlu0 %486
        %490 = vset.pattern.permute.xlu0 0
        %491 = vperm.xlu0 %490, %v473
        %v492 = vpop.permute.xlu0 %491
        %495 = vset.pattern.permute.xlu0 0
        %496 = vperm.xlu0 %495, %v474
        %v497 = vpop.permute.xlu0 %496
        %500 = vset.pattern.permute.xlu0 0
        %501 = vperm.xlu0 %500, %v475
        %v502 = vpop.permute.xlu0 %501
        %505 = vset.pattern.permute.xlu0 0
        %506 = vperm.xlu0 %505, %v476
        %v507 = vpop.permute.xlu0 %506
        %510 = vset.pattern.permute.xlu0 0
        %511 = vperm.xlu0 %510, %v477
        %v512 = vpop.permute.xlu0 %511
        %515 = vset.pattern.permute.xlu0 0
        %516 = vperm.xlu0 %515, %v478
        %v517 = vpop.permute.xlu0 %516
        %vm519 = vcmask 64512
        %v521 = vsel %vm519, %v463, 0
        %v524 = vsel %vm519, %v464, 0
        %v527 = vsel %vm519, %v465, 0
        %v530 = vsel %vm519, %v466, 0
        %v533 = vsel %vm519, %v467, 0
        %v536 = vsel %vm519, %v468, 0
        %v539 = vsel %vm519, %v469, 0
        %v542 = vsel %vm519, %v470, 0
        %544 = vmatprep.subr.mxu0 0.0
        %545 = vmatpush1.msra.mxu0 0.0
        %546 = vmatprep.subr.mxu0 0.0
        %547 = vmatpush1.msra.mxu0 0.0
        %548 = vmatprep.subr.mxu0 0.0
        %549 = vmatpush1.msra.mxu0 0.0
        %550 = vmatprep.subr.mxu0 0.0
        %551 = vmatpush1.msra.mxu0 0.0
        %552 = vmatprep.subr.mxu0 0.0
        %553 = vmatpush1.msra.mxu0 0.0
        %554 = vmatprep.subr.mxu0 0.0
        %555 = vmatpush1.msra.mxu0 0.0
        %556 = vmatprep.subr.mxu0 0.0
        %557 = vmatpush1.msra.mxu0 0.0
        %558 = vmatprep.subr.mxu0 0.0
        %559 = vmatpush1.msra.mxu0 0.0
        %560 = vmatprep.subr.mxu0 0.0
        %561 = vmatpush1.msra.mxu0 0.0
        %562 = vmatprep.subr.mxu0 0.0
        %563 = vmatpush1.msra.mxu0 0.0
        %564 = vmatprep.subr.mxu0 0.0
        %565 = vmatpush1.msra.mxu0 0.0
        %566 = vmatprep.subr.mxu0 0.0
        %567 = vmatpush1.msra.mxu0 0.0
        %568 = vmatprep.subr.mxu0 0.0
        %569 = vmatpush1.msra.mxu0 0.0
        %570 = vmatprep.subr.mxu0 0.0
        %571 = vmatpush1.msra.mxu0 0.0
        %572 = vmatprep.subr.mxu0 0.0
        %573 = vmatpush1.msra.mxu0 0.0
        %574 = vmatprep.subr.mxu0 0.0
        %575 = vmatpush1.msra.mxu0 %v462
        %576 = vmatprep.subr.mxu0 0.0
        %577 = vmatpush2.msra.mxu0 0.0
        %578 = vmatprep.subr.mxu0 0.0
        %579 = vmatpush2.msra.mxu0 0.0
        %580 = vmatprep.subr.mxu0 0.0
        %581 = vmatpush2.msra.mxu0 0.0
        %582 = vmatprep.subr.mxu0 0.0
        %583 = vmatpush2.msra.mxu0 0.0
        %584 = vmatprep.subr.mxu0 0.0
        %585 = vmatpush2.msra.mxu0 0.0
        %586 = vmatprep.subr.mxu0 0.0
        %587 = vmatpush2.msra.mxu0 0.0
        %588 = vmatprep.subr.mxu0 0.0
        %589 = vmatpush2.msra.mxu0 0.0
        %590 = vmatprep.subr.mxu0 0.0
        %591 = vmatpush2.msra.mxu0 0.0
        %592 = vmatprep.subr.mxu0 0.0
        %593 = vmatpush2.msra.mxu0 0.0
        %594 = vmatprep.subr.mxu0 0.0
        %595 = vmatpush2.msra.mxu0 0.0
        %596 = vmatprep.subr.mxu0 0.0
        %597 = vmatpush2.msra.mxu0 0.0
        %598 = vmatprep.subr.mxu0 0.0
        %599 = vmatpush2.msra.mxu0 0.0
        %600 = vmatprep.subr.mxu0 0.0
        %601 = vmatpush2.msra.mxu0 0.0
        %602 = vmatprep.subr.mxu0 0.0
        %603 = vmatpush2.msra.mxu0 0.0
        %604 = vmatprep.subr.mxu0 0.0
        %605 = vmatpush2.msra.mxu0 0.0
        %606 = vmatprep.subr.mxu0 0.0
        %607 = vmatpush2.msra.mxu0 0.0
        %608 = vmatprep.mubr.f32.mxu0 0.0
        %609 = vmatmul.mubr.f32.gmra.mxu0 %v521
        %v610 = vpop.f32.mrf.mxu0
        %v611 = vadd.f32 %v482, %v610
        %v612 = vpop.f32.mrf.mxu0
        %613 = vmatprep.mubr.f32.mxu0 0.0
        %614 = vmatmul.mubr.f32.gmra.mxu0 %v524
        %v615 = vpop.f32.mrf.mxu0
        %v616 = vadd.f32 %v487, %v615
        %v617 = vpop.f32.mrf.mxu0
        %618 = vmatprep.mubr.f32.mxu0 0.0
        %619 = vmatmul.mubr.f32.gmra.mxu0 %v527
        %v620 = vpop.f32.mrf.mxu0
        %v621 = vadd.f32 %v492, %v620
        %v622 = vpop.f32.mrf.mxu0
        %623 = vmatprep.mubr.f32.mxu0 0.0
        %624 = vmatmul.mubr.f32.gmra.mxu0 %v530
        %v625 = vpop.f32.mrf.mxu0
        %v626 = vadd.f32 %v497, %v625
        %v627 = vpop.f32.mrf.mxu0
        %628 = vmatprep.mubr.f32.mxu0 0.0
        %629 = vmatmul.mubr.f32.gmra.mxu0 %v533
        %v630 = vpop.f32.mrf.mxu0
        %v631 = vadd.f32 %v502, %v630
        %v632 = vpop.f32.mrf.mxu0
        %633 = vmatprep.mubr.f32.mxu0 0.0
        %634 = vmatmul.mubr.f32.gmra.mxu0 %v536
        %v635 = vpop.f32.mrf.mxu0
        %v636 = vadd.f32 %v507, %v635
        %v637 = vpop.f32.mrf.mxu0
        %638 = vmatprep.mubr.f32.mxu0 0.0
        %639 = vmatmul.mubr.f32.gmra.mxu0 %v539
        %v640 = vpop.f32.mrf.mxu0
        %v641 = vadd.f32 %v512, %v640
        %v642 = vpop.f32.mrf.mxu0
        %643 = vmatprep.mubr.f32.mxu0 0.0
        %644 = vmatmul.mubr.f32.gmra.mxu0 %v542
        %v645 = vpop.f32.mrf.mxu0
        %v646 = vadd.f32 %v517, %v645
        %v647 = vpop.f32.mrf.mxu0
        %648 = vdwg.mxu0
        %v649 = vmax.f32 %v611, 0.0
        %v650 = vmax.f32 %v616, 0.0
        %v651 = vmax.f32 %v621, 0.0
        %v652 = vmax.f32 %v626, 0.0
        %v653 = vmax.f32 %v631, 0.0
        %v654 = vmax.f32 %v636, 0.0
        %v655 = vmax.f32 %v641, 0.0
        %v656 = vmax.f32 %v646, 0.0
        %v657 = vld [vmem:[%s3] sm:$0xff]
        %v658 = vld [vmem:[%s3 + $0x8] sm:$0xff]
        %v659 = vld [vmem:[%s3 + $0x10] sm:$0xff]
        %v660 = vld [vmem:[%s3 + $0x18] sm:$0xff]
        %v661 = vld [vmem:[%s3 + $0x20] sm:$0xff]
        %v662 = vld [vmem:[%s3 + $0x28] sm:$0xff]
        %v663 = vld [vmem:[%s3 + $0x30] sm:$0xff]
        %v664 = vld [vmem:[%s3 + $0x38] sm:$0xff]
        %v665 = vld [vmem:[%s4] sm:$0xff]
        %v666 = vld [vmem:[%s4 + $0x8] sm:$0xff]
        %v667 = vld [vmem:[%s4 + $0x10] sm:$0xff]
        %v668 = vld [vmem:[%s4 + $0x18] sm:$0xff]
        %v669 = vld [vmem:[%s4 + $0x20] sm:$0xff]
        %v670 = vld [vmem:[%s4 + $0x28] sm:$0xff]
        %v671 = vld [vmem:[%s4 + $0x30] sm:$0xff]
        %v672 = vld [vmem:[%s4 + $0x38] sm:$0xff]
        %674 = vset.pattern.permute.xlu0 0
        %675 = vperm.xlu0 %674, %v665
        %v676 = vpop.permute.xlu0 %675
        %679 = vset.pattern.permute.xlu0 0
        %680 = vperm.xlu0 %679, %v666
        %v681 = vpop.permute.xlu0 %680
        %684 = vset.pattern.permute.xlu0 0
        %685 = vperm.xlu0 %684, %v667
        %v686 = vpop.permute.xlu0 %685
        %689 = vset.pattern.permute.xlu0 0
        %690 = vperm.xlu0 %689, %v668
        %v691 = vpop.permute.xlu0 %690
        %694 = vset.pattern.permute.xlu0 0
        %695 = vperm.xlu0 %694, %v669
        %v696 = vpop.permute.xlu0 %695
        %699 = vset.pattern.permute.xlu0 0
        %700 = vperm.xlu0 %699, %v670
        %v701 = vpop.permute.xlu0 %700
        %704 = vset.pattern.permute.xlu0 0
        %705 = vperm.xlu0 %704, %v671
        %v706 = vpop.permute.xlu0 %705
        %709 = vset.pattern.permute.xlu0 0
        %710 = vperm.xlu0 %709, %v672
        %v711 = vpop.permute.xlu0 %710
        %vm713 = vcmask 523264
        %v715 = vsel %vm713, %v657, 0
        %v718 = vsel %vm713, %v658, 0
        %v721 = vsel %vm713, %v659, 0
        %v724 = vsel %vm713, %v660, 0
        %v727 = vsel %vm713, %v661, 0
        %v730 = vsel %vm713, %v662, 0
        %v733 = vsel %vm713, %v663, 0
        %v736 = vsel %vm713, %v664, 0
        %738 = vmatprep.subr.mxu0 0.0
        %739 = vmatpush1.msra.mxu0 0.0
        %740 = vmatprep.subr.mxu0 0.0
        %741 = vmatpush1.msra.mxu0 0.0
        %742 = vmatprep.subr.mxu0 0.0
        %743 = vmatpush1.msra.mxu0 0.0
        %744 = vmatprep.subr.mxu0 0.0
        %745 = vmatpush1.msra.mxu0 0.0
        %746 = vmatprep.subr.mxu0 0.0
        %747 = vmatpush1.msra.mxu0 0.0
        %748 = vmatprep.subr.mxu0 0.0
        %749 = vmatpush1.msra.mxu0 0.0
        %750 = vmatprep.subr.mxu0 0.0
        %751 = vmatpush1.msra.mxu0 0.0
        %752 = vmatprep.subr.mxu0 0.0
        %753 = vmatpush1.msra.mxu0 0.0
        %754 = vmatprep.subr.mxu0 0.0
        %755 = vmatpush1.msra.mxu0 %v656
        %756 = vmatprep.subr.mxu0 0.0
        %757 = vmatpush1.msra.mxu0 %v655
        %758 = vmatprep.subr.mxu0 0.0
        %759 = vmatpush1.msra.mxu0 %v654
        %760 = vmatprep.subr.mxu0 0.0
        %761 = vmatpush1.msra.mxu0 %v653
        %762 = vmatprep.subr.mxu0 0.0
        %763 = vmatpush1.msra.mxu0 %v652
        %764 = vmatprep.subr.mxu0 0.0
        %765 = vmatpush1.msra.mxu0 %v651
        %766 = vmatprep.subr.mxu0 0.0
        %767 = vmatpush1.msra.mxu0 %v650
        %768 = vmatprep.subr.mxu0 0.0
        %769 = vmatpush1.msra.mxu0 %v649
        %770 = vmatprep.subr.mxu0 0.0
        %771 = vmatpush2.msra.mxu0 0.0
        %772 = vmatprep.subr.mxu0 0.0
        %773 = vmatpush2.msra.mxu0 0.0
        %774 = vmatprep.subr.mxu0 0.0
        %775 = vmatpush2.msra.mxu0 0.0
        %776 = vmatprep.subr.mxu0 0.0
        %777 = vmatpush2.msra.mxu0 0.0
        %778 = vmatprep.subr.mxu0 0.0
        %779 = vmatpush2.msra.mxu0 0.0
        %780 = vmatprep.subr.mxu0 0.0
        %781 = vmatpush2.msra.mxu0 0.0
        %782 = vmatprep.subr.mxu0 0.0
        %783 = vmatpush2.msra.mxu0 0.0
        %784 = vmatprep.subr.mxu0 0.0
        %785 = vmatpush2.msra.mxu0 0.0
        %786 = vmatprep.subr.mxu0 0.0
        %787 = vmatpush2.msra.mxu0 0.0
        %788 = vmatprep.subr.mxu0 0.0
        %789 = vmatpush2.msra.mxu0 0.0
        %790 = vmatprep.subr.mxu0 0.0
        %791 = vmatpush2.msra.mxu0 0.0
        %792 = vmatprep.subr.mxu0 0.0
        %793 = vmatpush2.msra.mxu0 0.0
        %794 = vmatprep.subr.mxu0 0.0
        %795 = vmatpush2.msra.mxu0 0.0
        %796 = vmatprep.subr.mxu0 0.0
        %797 = vmatpush2.msra.mxu0 0.0
        %798 = vmatprep.subr.mxu0 0.0
        %799 = vmatpush2.msra.mxu0 0.0
        %800 = vmatprep.subr.mxu0 0.0
        %801 = vmatpush2.msra.mxu0 0.0
        %802 = vmatprep.mubr.f32.mxu0 0.0
        %803 = vmatmul.mubr.f32.gmra.mxu0 %v715
        %v804 = vpop.f32.mrf.mxu0
        %v805 = vadd.f32 %v676, %v804
        %v806 = vpop.f32.mrf.mxu0
        %807 = vmatprep.mubr.f32.mxu0 0.0
        %808 = vmatmul.mubr.f32.gmra.mxu0 %v718
        %v809 = vpop.f32.mrf.mxu0
        %v810 = vadd.f32 %v681, %v809
        %v811 = vpop.f32.mrf.mxu0
        %812 = vmatprep.mubr.f32.mxu0 0.0
        %813 = vmatmul.mubr.f32.gmra.mxu0 %v721
        %v814 = vpop.f32.mrf.mxu0
        %v815 = vadd.f32 %v686, %v814
        %v816 = vpop.f32.mrf.mxu0
        %817 = vmatprep.mubr.f32.mxu0 0.0
        %818 = vmatmul.mubr.f32.gmra.mxu0 %v724
        %v819 = vpop.f32.mrf.mxu0
        %v820 = vadd.f32 %v691, %v819
        %v821 = vpop.f32.mrf.mxu0
        %822 = vmatprep.mubr.f32.mxu0 0.0
        %823 = vmatmul.mubr.f32.gmra.mxu0 %v727
        %v824 = vpop.f32.mrf.mxu0
        %v825 = vadd.f32 %v696, %v824
        %v826 = vpop.f32.mrf.mxu0
        %827 = vmatprep.mubr.f32.mxu0 0.0
        %828 = vmatmul.mubr.f32.gmra.mxu0 %v730
        %v829 = vpop.f32.mrf.mxu0
        %v830 = vadd.f32 %v701, %v829
        %v831 = vpop.f32.mrf.mxu0
        %832 = vmatprep.mubr.f32.mxu0 0.0
        %833 = vmatmul.mubr.f32.gmra.mxu0 %v733
        %v834 = vpop.f32.mrf.mxu0
        %v835 = vadd.f32 %v706, %v834
        %v836 = vpop.f32.mrf.mxu0
        %837 = vmatprep.mubr.f32.mxu0 0.0
        %838 = vmatmul.mubr.f32.gmra.mxu0 %v736
        %v839 = vpop.f32.mrf.mxu0
        %v840 = vadd.f32 %v711, %v839
        %v841 = vpop.f32.mrf.mxu0
        %842 = vdwg.mxu0
        %v843 = vmax.f32 %v805, 0.0
        %v844 = vmax.f32 %v810, 0.0
        %v845 = vmax.f32 %v815, 0.0
        %v846 = vmax.f32 %v820, 0.0
        %v847 = vmax.f32 %v825, 0.0
        %v848 = vmax.f32 %v830, 0.0
        %v849 = vmax.f32 %v835, 0.0
        %v850 = vmax.f32 %v840, 0.0
        %v851 = vld [vmem:[%s5] sm:$0xff]
        %v852 = vld [vmem:[%s5 + $0x8] sm:$0xff]
        %v853 = vld [vmem:[%s5 + $0x10] sm:$0xff]
        %v854 = vld [vmem:[%s5 + $0x18] sm:$0xff]
        %v855 = vld [vmem:[%s5 + $0x20] sm:$0xff]
        %v856 = vld [vmem:[%s5 + $0x28] sm:$0xff]
        %v857 = vld [vmem:[%s5 + $0x30] sm:$0xff]
        %v858 = vld [vmem:[%s5 + $0x38] sm:$0xff]
        %v859 = vld [vmem:[%s5 + $0x40] sm:$0xff]
        %v860 = vld [vmem:[%s5 + $0x48] sm:$0xff]
        %v861 = vld [vmem:[%s5 + $0x50] sm:$0xff]
        %v862 = vld [vmem:[%s5 + $0x58] sm:$0xff]
        %v863 = vld [vmem:[%s5 + $0x60] sm:$0xff]
        %v864 = vld [vmem:[%s5 + $0x68] sm:$0xff]
        %v865 = vld [vmem:[%s5 + $0x70] sm:$0xff]
        %v866 = vld [vmem:[%s5 + $0x78] sm:$0xff]
        %v867 = vld [vmem:[%s6] sm:$0xff]
        %v868 = vld [vmem:[%s6 + $0x8] sm:$0xff]
        %v869 = vld [vmem:[%s6 + $0x10] sm:$0xff]
        %v870 = vld [vmem:[%s6 + $0x18] sm:$0xff]
        %v871 = vld [vmem:[%s6 + $0x20] sm:$0xff]
        %v872 = vld [vmem:[%s6 + $0x28] sm:$0xff]
        %v873 = vld [vmem:[%s6 + $0x30] sm:$0xff]
        %v874 = vld [vmem:[%s6 + $0x38] sm:$0xff]
        %v875 = vld [vmem:[%s6 + $0x40] sm:$0xff]
        %v876 = vld [vmem:[%s6 + $0x48] sm:$0xff]
        %v877 = vld [vmem:[%s6 + $0x50] sm:$0xff]
        %v878 = vld [vmem:[%s6 + $0x58] sm:$0xff]
        %v879 = vld [vmem:[%s6 + $0x60] sm:$0xff]
        %v880 = vld [vmem:[%s6 + $0x68] sm:$0xff]
        %v881 = vld [vmem:[%s6 + $0x70] sm:$0xff]
        %v882 = vld [vmem:[%s6 + $0x78] sm:$0xff]
        %884 = vset.pattern.permute.xlu0 0
        %885 = vperm.xlu0 %884, %v867
        %v886 = vpop.permute.xlu0 %885
        %889 = vset.pattern.permute.xlu0 0
        %890 = vperm.xlu0 %889, %v868
        %v891 = vpop.permute.xlu0 %890
        %894 = vset.pattern.permute.xlu0 0
        %895 = vperm.xlu0 %894, %v869
        %v896 = vpop.permute.xlu0 %895
        %899 = vset.pattern.permute.xlu0 0
        %900 = vperm.xlu0 %899, %v870
        %v901 = vpop.permute.xlu0 %900
        %904 = vset.pattern.permute.xlu0 0
        %905 = vperm.xlu0 %904, %v871
        %v906 = vpop.permute.xlu0 %905
        %909 = vset.pattern.permute.xlu0 0
        %910 = vperm.xlu0 %909, %v872
        %v911 = vpop.permute.xlu0 %910
        %914 = vset.pattern.permute.xlu0 0
        %915 = vperm.xlu0 %914, %v873
        %v916 = vpop.permute.xlu0 %915
        %919 = vset.pattern.permute.xlu0 0
        %920 = vperm.xlu0 %919, %v874
        %v921 = vpop.permute.xlu0 %920
        %924 = vset.pattern.permute.xlu0 0
        %925 = vperm.xlu0 %924, %v875
        %v926 = vpop.permute.xlu0 %925
        %929 = vset.pattern.permute.xlu0 0
        %930 = vperm.xlu0 %929, %v876
        %v931 = vpop.permute.xlu0 %930
        %934 = vset.pattern.permute.xlu0 0
        %935 = vperm.xlu0 %934, %v877
        %v936 = vpop.permute.xlu0 %935
        %939 = vset.pattern.permute.xlu0 0
        %940 = vperm.xlu0 %939, %v878
        %v941 = vpop.permute.xlu0 %940
        %944 = vset.pattern.permute.xlu0 0
        %945 = vperm.xlu0 %944, %v879
        %v946 = vpop.permute.xlu0 %945
        %949 = vset.pattern.permute.xlu0 0
        %950 = vperm.xlu0 %949, %v880
        %v951 = vpop.permute.xlu0 %950
        %954 = vset.pattern.permute.xlu0 0
        %955 = vperm.xlu0 %954, %v881
        %v956 = vpop.permute.xlu0 %955
        %959 = vset.pattern.permute.xlu0 0
        %960 = vperm.xlu0 %959, %v882
        %v961 = vpop.permute.xlu0 %960
        %v964 = vsel %vm713, %v851, 0
        %v967 = vsel %vm713, %v852, 0
        %v970 = vsel %vm713, %v853, 0
        %v973 = vsel %vm713, %v854, 0
        %v976 = vsel %vm713, %v855, 0
        %v979 = vsel %vm713, %v856, 0
        %v982 = vsel %vm713, %v857, 0
        %v985 = vsel %vm713, %v858, 0
        %v988 = vsel %vm713, %v859, 0
        %v991 = vsel %vm713, %v860, 0
        %v994 = vsel %vm713, %v861, 0
        %v997 = vsel %vm713, %v862, 0
        %v1000 = vsel %vm713, %v863, 0
        %v1003 = vsel %vm713, %v864, 0
        %v1006 = vsel %vm713, %v865, 0
        %v1009 = vsel %vm713, %v866, 0
        %1011 = vmatprep.subr.mxu0 0.0
        %1012 = vmatpush1.msra.mxu0 0.0
        %1013 = vmatprep.subr.mxu0 0.0
        %1014 = vmatpush1.msra.mxu0 0.0
        %1015 = vmatprep.subr.mxu0 0.0
        %1016 = vmatpush1.msra.mxu0 0.0
        %1017 = vmatprep.subr.mxu0 0.0
        %1018 = vmatpush1.msra.mxu0 0.0
        %1019 = vmatprep.subr.mxu0 0.0
        %1020 = vmatpush1.msra.mxu0 0.0
        %1021 = vmatprep.subr.mxu0 0.0
        %1022 = vmatpush1.msra.mxu0 0.0
        %1023 = vmatprep.subr.mxu0 0.0
        %1024 = vmatpush1.msra.mxu0 0.0
        %1025 = vmatprep.subr.mxu0 0.0
        %1026 = vmatpush1.msra.mxu0 0.0
        %1027 = vmatprep.subr.mxu0 0.0
        %1028 = vmatpush1.msra.mxu0 %v850
        %1029 = vmatprep.subr.mxu0 0.0
        %1030 = vmatpush1.msra.mxu0 %v849
        %1031 = vmatprep.subr.mxu0 0.0
        %1032 = vmatpush1.msra.mxu0 %v848
        %1033 = vmatprep.subr.mxu0 0.0
        %1034 = vmatpush1.msra.mxu0 %v847
        %1035 = vmatprep.subr.mxu0 0.0
        %1036 = vmatpush1.msra.mxu0 %v846
        %1037 = vmatprep.subr.mxu0 0.0
        %1038 = vmatpush1.msra.mxu0 %v845
        %1039 = vmatprep.subr.mxu0 0.0
        %1040 = vmatpush1.msra.mxu0 %v844
        %1041 = vmatprep.subr.mxu0 0.0
        %1042 = vmatpush1.msra.mxu0 %v843
        %1043 = vmatprep.subr.mxu0 0.0
        %1044 = vmatpush2.msra.mxu0 0.0
        %1045 = vmatprep.subr.mxu0 0.0
        %1046 = vmatpush2.msra.mxu0 0.0
        %1047 = vmatprep.subr.mxu0 0.0
        %1048 = vmatpush2.msra.mxu0 0.0
        %1049 = vmatprep.subr.mxu0 0.0
        %1050 = vmatpush2.msra.mxu0 0.0
        %1051 = vmatprep.subr.mxu0 0.0
        %1052 = vmatpush2.msra.mxu0 0.0
        %1053 = vmatprep.subr.mxu0 0.0
        %1054 = vmatpush2.msra.mxu0 0.0
        %1055 = vmatprep.subr.mxu0 0.0
        %1056 = vmatpush2.msra.mxu0 0.0
        %1057 = vmatprep.subr.mxu0 0.0
        %1058 = vmatpush2.msra.mxu0 0.0
        %1059 = vmatprep.subr.mxu0 0.0
        %1060 = vmatpush2.msra.mxu0 0.0
        %1061 = vmatprep.subr.mxu0 0.0
        %1062 = vmatpush2.msra.mxu0 0.0
        %1063 = vmatprep.subr.mxu0 0.0
        %1064 = vmatpush2.msra.mxu0 0.0
        %1065 = vmatprep.subr.mxu0 0.0
        %1066 = vmatpush2.msra.mxu0 0.0
        %1067 = vmatprep.subr.mxu0 0.0
        %1068 = vmatpush2.msra.mxu0 0.0
        %1069 = vmatprep.subr.mxu0 0.0
        %1070 = vmatpush2.msra.mxu0 0.0
        %1071 = vmatprep.subr.mxu0 0.0
        %1072 = vmatpush2.msra.mxu0 0.0
        %1073 = vmatprep.subr.mxu0 0.0
        %1074 = vmatpush2.msra.mxu0 0.0
        %1075 = vmatprep.mubr.f32.mxu0 0.0
        %1076 = vmatmul.mubr.f32.gmra.mxu0 %v964
        %v1077 = vpop.f32.mrf.mxu0
        %v1078 = vadd.f32 %v886, %v1077
        %v1079 = vpop.f32.mrf.mxu0
        %1080 = vmatprep.mubr.f32.mxu0 0.0
        %1081 = vmatmul.mubr.f32.gmra.mxu0 %v967
        %v1082 = vpop.f32.mrf.mxu0
        %v1083 = vadd.f32 %v891, %v1082
        %v1084 = vpop.f32.mrf.mxu0
        %1085 = vmatprep.mubr.f32.mxu0 0.0
        %1086 = vmatmul.mubr.f32.gmra.mxu0 %v970
        %v1087 = vpop.f32.mrf.mxu0
        %v1088 = vadd.f32 %v896, %v1087
        %v1089 = vpop.f32.mrf.mxu0
        %1090 = vmatprep.mubr.f32.mxu0 0.0
        %1091 = vmatmul.mubr.f32.gmra.mxu0 %v973
        %v1092 = vpop.f32.mrf.mxu0
        %v1093 = vadd.f32 %v901, %v1092
        %v1094 = vpop.f32.mrf.mxu0
        %1095 = vmatprep.mubr.f32.mxu0 0.0
        %1096 = vmatmul.mubr.f32.gmra.mxu0 %v976
        %v1097 = vpop.f32.mrf.mxu0
        %v1098 = vadd.f32 %v906, %v1097
        %v1099 = vpop.f32.mrf.mxu0
        %1100 = vmatprep.mubr.f32.mxu0 0.0
        %1101 = vmatmul.mubr.f32.gmra.mxu0 %v979
        %v1102 = vpop.f32.mrf.mxu0
        %v1103 = vadd.f32 %v911, %v1102
        %v1104 = vpop.f32.mrf.mxu0
        %1105 = vmatprep.mubr.f32.mxu0 0.0
        %1106 = vmatmul.mubr.f32.gmra.mxu0 %v982
        %v1107 = vpop.f32.mrf.mxu0
        %v1108 = vadd.f32 %v916, %v1107
        %v1109 = vpop.f32.mrf.mxu0
        %1110 = vmatprep.mubr.f32.mxu0 0.0
        %1111 = vmatmul.mubr.f32.gmra.mxu0 %v985
        %v1112 = vpop.f32.mrf.mxu0
        %v1113 = vadd.f32 %v921, %v1112
        %v1114 = vpop.f32.mrf.mxu0
        %1115 = vmatprep.mubr.f32.mxu0 0.0
        %1116 = vmatmul.mubr.f32.gmra.mxu0 %v988
        %v1117 = vpop.f32.mrf.mxu0
        %v1118 = vadd.f32 %v926, %v1117
        %v1119 = vpop.f32.mrf.mxu0
        %1120 = vmatprep.mubr.f32.mxu0 0.0
        %1121 = vmatmul.mubr.f32.gmra.mxu0 %v991
        %v1122 = vpop.f32.mrf.mxu0
        %v1123 = vadd.f32 %v931, %v1122
        %v1124 = vpop.f32.mrf.mxu0
        %1125 = vmatprep.mubr.f32.mxu0 0.0
        %1126 = vmatmul.mubr.f32.gmra.mxu0 %v994
        %v1127 = vpop.f32.mrf.mxu0
        %v1128 = vadd.f32 %v936, %v1127
        %v1129 = vpop.f32.mrf.mxu0
        %1130 = vmatprep.mubr.f32.mxu0 0.0
        %1131 = vmatmul.mubr.f32.gmra.mxu0 %v997
        %v1132 = vpop.f32.mrf.mxu0
        %v1133 = vadd.f32 %v941, %v1132
        %v1134 = vpop.f32.mrf.mxu0
        %1135 = vmatprep.mubr.f32.mxu0 0.0
        %1136 = vmatmul.mubr.f32.gmra.mxu0 %v1000
        %v1137 = vpop.f32.mrf.mxu0
        %v1138 = vadd.f32 %v946, %v1137
        %v1139 = vpop.f32.mrf.mxu0
        %1140 = vmatprep.mubr.f32.mxu0 0.0
        %1141 = vmatmul.mubr.f32.gmra.mxu0 %v1003
        %v1142 = vpop.f32.mrf.mxu0
        %v1143 = vadd.f32 %v951, %v1142
        %v1144 = vpop.f32.mrf.mxu0
        %1145 = vmatprep.mubr.f32.mxu0 0.0
        %1146 = vmatmul.mubr.f32.gmra.mxu0 %v1006
        %v1147 = vpop.f32.mrf.mxu0
        %v1148 = vadd.f32 %v956, %v1147
        %v1149 = vpop.f32.mrf.mxu0
        %1150 = vmatprep.mubr.f32.mxu0 0.0
        %1151 = vmatmul.mubr.f32.gmra.mxu0 %v1009
        %v1152 = vpop.f32.mrf.mxu0
        %v1153 = vadd.f32 %v961, %v1152
        %v1154 = vpop.f32.mrf.mxu0
        %1155 = vdwg.mxu0
        %v1156 = vmax.f32 %v1078, 0.0
        %v1157 = vmax.f32 %v1083, 0.0
        %v1158 = vmax.f32 %v1088, 0.0
        %v1159 = vmax.f32 %v1093, 0.0
        %v1160 = vmax.f32 %v1098, 0.0
        %v1161 = vmax.f32 %v1103, 0.0
        %v1162 = vmax.f32 %v1108, 0.0
        %v1163 = vmax.f32 %v1113, 0.0
        %v1164 = vmax.f32 %v1118, 0.0
        %v1165 = vmax.f32 %v1123, 0.0
        %v1166 = vmax.f32 %v1128, 0.0
        %v1167 = vmax.f32 %v1133, 0.0
        %v1168 = vmax.f32 %v1138, 0.0
        %v1169 = vmax.f32 %v1143, 0.0
        %v1170 = vmax.f32 %v1148, 0.0
        %v1171 = vmax.f32 %v1153, 0.0
        %v1172 = vld [vmem:[%s7] sm:$0xff]
        %v1173 = vld [vmem:[%s7 + $0x8] sm:$0xff]
        %v1174 = vld [vmem:[%s7 + $0x10] sm:$0xff]
        %v1175 = vld [vmem:[%s7 + $0x18] sm:$0xff]
        %v1176 = vld [vmem:[%s7 + $0x20] sm:$0xff]
        %v1177 = vld [vmem:[%s7 + $0x28] sm:$0xff]
        %v1178 = vld [vmem:[%s7 + $0x30] sm:$0xff]
        %v1179 = vld [vmem:[%s7 + $0x38] sm:$0xff]
        %v1180 = vld [vmem:[%s7 + $0x40] sm:$0xff]
        %v1181 = vld [vmem:[%s7 + $0x48] sm:$0xff]
        %v1182 = vld [vmem:[%s7 + $0x50] sm:$0xff]
        %v1183 = vld [vmem:[%s7 + $0x58] sm:$0xff]
        %v1184 = vld [vmem:[%s7 + $0x60] sm:$0xff]
        %v1185 = vld [vmem:[%s7 + $0x68] sm:$0xff]
        %v1186 = vld [vmem:[%s7 + $0x70] sm:$0xff]
        %v1187 = vld [vmem:[%s7 + $0x78] sm:$0xff]
        %v1188 = vld [vmem:[%s8] sm:$0xff]
        %v1189 = vld [vmem:[%s8 + $0x8] sm:$0xff]
        %v1190 = vld [vmem:[%s8 + $0x10] sm:$0xff]
        %v1191 = vld [vmem:[%s8 + $0x18] sm:$0xff]
        %v1192 = vld [vmem:[%s8 + $0x20] sm:$0xff]
        %v1193 = vld [vmem:[%s8 + $0x28] sm:$0xff]
        %v1194 = vld [vmem:[%s8 + $0x30] sm:$0xff]
        %v1195 = vld [vmem:[%s8 + $0x38] sm:$0xff]
        %v1196 = vld [vmem:[%s8 + $0x40] sm:$0xff]
        %v1197 = vld [vmem:[%s8 + $0x48] sm:$0xff]
        %v1198 = vld [vmem:[%s8 + $0x50] sm:$0xff]
        %v1199 = vld [vmem:[%s8 + $0x58] sm:$0xff]
        %v1200 = vld [vmem:[%s8 + $0x60] sm:$0xff]
        %v1201 = vld [vmem:[%s8 + $0x68] sm:$0xff]
        %v1202 = vld [vmem:[%s8 + $0x70] sm:$0xff]
        %v1203 = vld [vmem:[%s8 + $0x78] sm:$0xff]
        %1205 = vset.pattern.permute.xlu0 0
        %1206 = vperm.xlu0 %1205, %v1188
        %v1207 = vpop.permute.xlu0 %1206
        %1210 = vset.pattern.permute.xlu0 0
        %1211 = vperm.xlu0 %1210, %v1189
        %v1212 = vpop.permute.xlu0 %1211
        %1215 = vset.pattern.permute.xlu0 0
        %1216 = vperm.xlu0 %1215, %v1190
        %v1217 = vpop.permute.xlu0 %1216
        %1220 = vset.pattern.permute.xlu0 0
        %1221 = vperm.xlu0 %1220, %v1191
        %v1222 = vpop.permute.xlu0 %1221
        %1225 = vset.pattern.permute.xlu0 0
        %1226 = vperm.xlu0 %1225, %v1192
        %v1227 = vpop.permute.xlu0 %1226
        %1230 = vset.pattern.permute.xlu0 0
        %1231 = vperm.xlu0 %1230, %v1193
        %v1232 = vpop.permute.xlu0 %1231
        %1235 = vset.pattern.permute.xlu0 0
        %1236 = vperm.xlu0 %1235, %v1194
        %v1237 = vpop.permute.xlu0 %1236
        %1240 = vset.pattern.permute.xlu0 0
        %1241 = vperm.xlu0 %1240, %v1195
        %v1242 = vpop.permute.xlu0 %1241
        %1245 = vset.pattern.permute.xlu0 0
        %1246 = vperm.xlu0 %1245, %v1196
        %v1247 = vpop.permute.xlu0 %1246
        %1250 = vset.pattern.permute.xlu0 0
        %1251 = vperm.xlu0 %1250, %v1197
        %v1252 = vpop.permute.xlu0 %1251
        %1255 = vset.pattern.permute.xlu0 0
        %1256 = vperm.xlu0 %1255, %v1198
        %v1257 = vpop.permute.xlu0 %1256
        %1260 = vset.pattern.permute.xlu0 0
        %1261 = vperm.xlu0 %1260, %v1199
        %v1262 = vpop.permute.xlu0 %1261
        %1265 = vset.pattern.permute.xlu0 0
        %1266 = vperm.xlu0 %1265, %v1200
        %v1267 = vpop.permute.xlu0 %1266
        %1270 = vset.pattern.permute.xlu0 0
        %1271 = vperm.xlu0 %1270, %v1201
        %v1272 = vpop.permute.xlu0 %1271
        %1275 = vset.pattern.permute.xlu0 0
        %1276 = vperm.xlu0 %1275, %v1202
        %v1277 = vpop.permute.xlu0 %1276
        %1280 = vset.pattern.permute.xlu0 0
        %1281 = vperm.xlu0 %1280, %v1203
        %v1282 = vpop.permute.xlu0 %1281
        %1284 = vmatprep.subr.mxu0 0.0
        %1285 = vmatpush1.msra.mxu0 %v1171
        %1286 = vmatprep.subr.mxu0 0.0
        %1287 = vmatpush1.msra.mxu0 %v1170
        %1288 = vmatprep.subr.mxu0 0.0
        %1289 = vmatpush1.msra.mxu0 %v1169
        %1290 = vmatprep.subr.mxu0 0.0
        %1291 = vmatpush1.msra.mxu0 %v1168
        %1292 = vmatprep.subr.mxu0 0.0
        %1293 = vmatpush1.msra.mxu0 %v1167
        %1294 = vmatprep.subr.mxu0 0.0
        %1295 = vmatpush1.msra.mxu0 %v1166
        %1296 = vmatprep.subr.mxu0 0.0
        %1297 = vmatpush1.msra.mxu0 %v1165
        %1298 = vmatprep.subr.mxu0 0.0
        %1299 = vmatpush1.msra.mxu0 %v1164
        %1300 = vmatprep.subr.mxu0 0.0
        %1301 = vmatpush1.msra.mxu0 %v1163
        %1302 = vmatprep.subr.mxu0 0.0
        %1303 = vmatpush1.msra.mxu0 %v1162
        %1304 = vmatprep.subr.mxu0 0.0
        %1305 = vmatpush1.msra.mxu0 %v1161
        %1306 = vmatprep.subr.mxu0 0.0
        %1307 = vmatpush1.msra.mxu0 %v1160
        %1308 = vmatprep.subr.mxu0 0.0
        %1309 = vmatpush1.msra.mxu0 %v1159
        %1310 = vmatprep.subr.mxu0 0.0
        %1311 = vmatpush1.msra.mxu0 %v1158
        %1312 = vmatprep.subr.mxu0 0.0
        %1313 = vmatpush1.msra.mxu0 %v1157
        %1314 = vmatprep.subr.mxu0 0.0
        %1315 = vmatpush1.msra.mxu0 %v1156
        %1316 = vmatprep.subr.mxu0 0.0
        %1317 = vmatpush2.msra.mxu0 0.0
        %1318 = vmatprep.subr.mxu0 0.0
        %1319 = vmatpush2.msra.mxu0 0.0
        %1320 = vmatprep.subr.mxu0 0.0
        %1321 = vmatpush2.msra.mxu0 0.0
        %1322 = vmatprep.subr.mxu0 0.0
        %1323 = vmatpush2.msra.mxu0 0.0
        %1324 = vmatprep.subr.mxu0 0.0
        %1325 = vmatpush2.msra.mxu0 0.0
        %1326 = vmatprep.subr.mxu0 0.0
        %1327 = vmatpush2.msra.mxu0 0.0
        %1328 = vmatprep.subr.mxu0 0.0
        %1329 = vmatpush2.msra.mxu0 0.0
        %1330 = vmatprep.subr.mxu0 0.0
        %1331 = vmatpush2.msra.mxu0 0.0
        %1332 = vmatprep.subr.mxu0 0.0
        %1333 = vmatpush2.msra.mxu0 0.0
        %1334 = vmatprep.subr.mxu0 0.0
        %1335 = vmatpush2.msra.mxu0 0.0
        %1336 = vmatprep.subr.mxu0 0.0
        %1337 = vmatpush2.msra.mxu0 0.0
        %1338 = vmatprep.subr.mxu0 0.0
        %1339 = vmatpush2.msra.mxu0 0.0
        %1340 = vmatprep.subr.mxu0 0.0
        %1341 = vmatpush2.msra.mxu0 0.0
        %1342 = vmatprep.subr.mxu0 0.0
        %1343 = vmatpush2.msra.mxu0 0.0
        %1344 = vmatprep.subr.mxu0 0.0
        %1345 = vmatpush2.msra.mxu0 0.0
        %1346 = vmatprep.subr.mxu0 0.0
        %1347 = vmatpush2.msra.mxu0 0.0
        %1348 = vmatprep.mubr.f32.mxu0 0.0
        %1349 = vmatmul.mubr.f32.gmra.mxu0 %v1172
        %v1350 = vpop.f32.mrf.mxu0
        %v1351 = vadd.f32 %v1207, %v1350
        %v1352 = vpop.f32.mrf.mxu0
        %1353 = vmatprep.mubr.f32.mxu0 0.0
        %1354 = vmatmul.mubr.f32.gmra.mxu0 %v1173
        %v1355 = vpop.f32.mrf.mxu0
        %v1356 = vadd.f32 %v1212, %v1355
        %v1357 = vpop.f32.mrf.mxu0
        %1358 = vmatprep.mubr.f32.mxu0 0.0
        %1359 = vmatmul.mubr.f32.gmra.mxu0 %v1174
        %v1360 = vpop.f32.mrf.mxu0
        %v1361 = vadd.f32 %v1217, %v1360
        %v1362 = vpop.f32.mrf.mxu0
        %1363 = vmatprep.mubr.f32.mxu0 0.0
        %1364 = vmatmul.mubr.f32.gmra.mxu0 %v1175
        %v1365 = vpop.f32.mrf.mxu0
        %v1366 = vadd.f32 %v1222, %v1365
        %v1367 = vpop.f32.mrf.mxu0
        %1368 = vmatprep.mubr.f32.mxu0 0.0
        %1369 = vmatmul.mubr.f32.gmra.mxu0 %v1176
        %v1370 = vpop.f32.mrf.mxu0
        %v1371 = vadd.f32 %v1227, %v1370
        %v1372 = vpop.f32.mrf.mxu0
        %1373 = vmatprep.mubr.f32.mxu0 0.0
        %1374 = vmatmul.mubr.f32.gmra.mxu0 %v1177
        %v1375 = vpop.f32.mrf.mxu0
        %v1376 = vadd.f32 %v1232, %v1375
        %v1377 = vpop.f32.mrf.mxu0
        %1378 = vmatprep.mubr.f32.mxu0 0.0
        %1379 = vmatmul.mubr.f32.gmra.mxu0 %v1178
        %v1380 = vpop.f32.mrf.mxu0
        %v1381 = vadd.f32 %v1237, %v1380
        %v1382 = vpop.f32.mrf.mxu0
        %1383 = vmatprep.mubr.f32.mxu0 0.0
        %1384 = vmatmul.mubr.f32.gmra.mxu0 %v1179
        %v1385 = vpop.f32.mrf.mxu0
        %v1386 = vadd.f32 %v1242, %v1385
        %v1387 = vpop.f32.mrf.mxu0
        %1388 = vmatprep.mubr.f32.mxu0 0.0
        %1389 = vmatmul.mubr.f32.gmra.mxu0 %v1180
        %v1390 = vpop.f32.mrf.mxu0
        %v1391 = vadd.f32 %v1247, %v1390
        %v1392 = vpop.f32.mrf.mxu0
        %1393 = vmatprep.mubr.f32.mxu0 0.0
        %1394 = vmatmul.mubr.f32.gmra.mxu0 %v1181
        %v1395 = vpop.f32.mrf.mxu0
        %v1396 = vadd.f32 %v1252, %v1395
        %v1397 = vpop.f32.mrf.mxu0
        %1398 = vmatprep.mubr.f32.mxu0 0.0
        %1399 = vmatmul.mubr.f32.gmra.mxu0 %v1182
        %v1400 = vpop.f32.mrf.mxu0
        %v1401 = vadd.f32 %v1257, %v1400
        %v1402 = vpop.f32.mrf.mxu0
        %1403 = vmatprep.mubr.f32.mxu0 0.0
        %1404 = vmatmul.mubr.f32.gmra.mxu0 %v1183
        %v1405 = vpop.f32.mrf.mxu0
        %v1406 = vadd.f32 %v1262, %v1405
        %v1407 = vpop.f32.mrf.mxu0
        %1408 = vmatprep.mubr.f32.mxu0 0.0
        %1409 = vmatmul.mubr.f32.gmra.mxu0 %v1184
        %v1410 = vpop.f32.mrf.mxu0
        %v1411 = vadd.f32 %v1267, %v1410
        %v1412 = vpop.f32.mrf.mxu0
        %1413 = vmatprep.mubr.f32.mxu0 0.0
        %1414 = vmatmul.mubr.f32.gmra.mxu0 %v1185
        %v1415 = vpop.f32.mrf.mxu0
        %v1416 = vadd.f32 %v1272, %v1415
        %v1417 = vpop.f32.mrf.mxu0
        %1418 = vmatprep.mubr.f32.mxu0 0.0
        %1419 = vmatmul.mubr.f32.gmra.mxu0 %v1186
        %v1420 = vpop.f32.mrf.mxu0
        %v1421 = vadd.f32 %v1277, %v1420
        %v1422 = vpop.f32.mrf.mxu0
        %1423 = vmatprep.mubr.f32.mxu0 0.0
        %1424 = vmatmul.mubr.f32.gmra.mxu0 %v1187
        %v1425 = vpop.f32.mrf.mxu0
        %v1426 = vadd.f32 %v1282, %v1425
        %v1427 = vpop.f32.mrf.mxu0
        %1428 = vdwg.mxu0
        %v1429 = vmax.f32 %v1351, 0.0
        %v1430 = vmax.f32 %v1356, 0.0
        %v1431 = vmax.f32 %v1361, 0.0
        %v1432 = vmax.f32 %v1366, 0.0
        %v1433 = vmax.f32 %v1371, 0.0
        %v1434 = vmax.f32 %v1376, 0.0
        %v1435 = vmax.f32 %v1381, 0.0
        %v1436 = vmax.f32 %v1386, 0.0
        %v1437 = vmax.f32 %v1391, 0.0
        %v1438 = vmax.f32 %v1396, 0.0
        %v1439 = vmax.f32 %v1401, 0.0
        %v1440 = vmax.f32 %v1406, 0.0
        %v1441 = vmax.f32 %v1411, 0.0
        %v1442 = vmax.f32 %v1416, 0.0
        %v1443 = vmax.f32 %v1421, 0.0
        %v1444 = vmax.f32 %v1426, 0.0
        %v1445 = vld [vmem:[%s9] sm:$0xff]
        %v1446 = vld [vmem:[%s9 + $0x8] sm:$0xff]
        %v1447 = vld [vmem:[%s9 + $0x10] sm:$0xff]
        %v1448 = vld [vmem:[%s9 + $0x18] sm:$0xff]
        %v1449 = vld [vmem:[%s9 + $0x20] sm:$0xff]
        %v1450 = vld [vmem:[%s9 + $0x28] sm:$0xff]
        %v1451 = vld [vmem:[%s9 + $0x30] sm:$0xff]
        %v1452 = vld [vmem:[%s9 + $0x38] sm:$0xff]
        %v1453 = vld [vmem:[%s9 + $0x40] sm:$0xff]
        %v1454 = vld [vmem:[%s9 + $0x48] sm:$0xff]
        %v1455 = vld [vmem:[%s9 + $0x50] sm:$0xff]
        %v1456 = vld [vmem:[%s9 + $0x58] sm:$0xff]
        %v1457 = vld [vmem:[%s9 + $0x60] sm:$0xff]
        %v1458 = vld [vmem:[%s9 + $0x68] sm:$0xff]
        %v1459 = vld [vmem:[%s9 + $0x70] sm:$0xff]
        %v1460 = vld [vmem:[%s9 + $0x78] sm:$0xff]
        %v1461 = vld [vmem:[%s10] sm:$0xff]
        %v1462 = vld [vmem:[%s10 + $0x8] sm:$0xff]
        %v1463 = vld [vmem:[%s10 + $0x10] sm:$0xff]
        %v1464 = vld [vmem:[%s10 + $0x18] sm:$0xff]
        %v1465 = vld [vmem:[%s10 + $0x20] sm:$0xff]
        %v1466 = vld [vmem:[%s10 + $0x28] sm:$0xff]
        %v1467 = vld [vmem:[%s10 + $0x30] sm:$0xff]
        %v1468 = vld [vmem:[%s10 + $0x38] sm:$0xff]
        %v1469 = vld [vmem:[%s10 + $0x40] sm:$0xff]
        %v1470 = vld [vmem:[%s10 + $0x48] sm:$0xff]
        %v1471 = vld [vmem:[%s10 + $0x50] sm:$0xff]
        %v1472 = vld [vmem:[%s10 + $0x58] sm:$0xff]
        %v1473 = vld [vmem:[%s10 + $0x60] sm:$0xff]
        %v1474 = vld [vmem:[%s10 + $0x68] sm:$0xff]
        %v1475 = vld [vmem:[%s10 + $0x70] sm:$0xff]
        %v1476 = vld [vmem:[%s10 + $0x78] sm:$0xff]
        %1478 = vset.pattern.permute.xlu0 0
        %1479 = vperm.xlu0 %1478, %v1461
        %v1480 = vpop.permute.xlu0 %1479
        %1483 = vset.pattern.permute.xlu0 0
        %1484 = vperm.xlu0 %1483, %v1462
        %v1485 = vpop.permute.xlu0 %1484
        %1488 = vset.pattern.permute.xlu0 0
        %1489 = vperm.xlu0 %1488, %v1463
        %v1490 = vpop.permute.xlu0 %1489
        %1493 = vset.pattern.permute.xlu0 0
        %1494 = vperm.xlu0 %1493, %v1464
        %v1495 = vpop.permute.xlu0 %1494
        %1498 = vset.pattern.permute.xlu0 0
        %1499 = vperm.xlu0 %1498, %v1465
        %v1500 = vpop.permute.xlu0 %1499
        %1503 = vset.pattern.permute.xlu0 0
        %1504 = vperm.xlu0 %1503, %v1466
        %v1505 = vpop.permute.xlu0 %1504
        %1508 = vset.pattern.permute.xlu0 0
        %1509 = vperm.xlu0 %1508, %v1467
        %v1510 = vpop.permute.xlu0 %1509
        %1513 = vset.pattern.permute.xlu0 0
        %1514 = vperm.xlu0 %1513, %v1468
        %v1515 = vpop.permute.xlu0 %1514
        %1518 = vset.pattern.permute.xlu0 0
        %1519 = vperm.xlu0 %1518, %v1469
        %v1520 = vpop.permute.xlu0 %1519
        %1523 = vset.pattern.permute.xlu0 0
        %1524 = vperm.xlu0 %1523, %v1470
        %v1525 = vpop.permute.xlu0 %1524
        %1528 = vset.pattern.permute.xlu0 0
        %1529 = vperm.xlu0 %1528, %v1471
        %v1530 = vpop.permute.xlu0 %1529
        %1533 = vset.pattern.permute.xlu0 0
        %1534 = vperm.xlu0 %1533, %v1472
        %v1535 = vpop.permute.xlu0 %1534
        %1538 = vset.pattern.permute.xlu0 0
        %1539 = vperm.xlu0 %1538, %v1473
        %v1540 = vpop.permute.xlu0 %1539
        %1543 = vset.pattern.permute.xlu0 0
        %1544 = vperm.xlu0 %1543, %v1474
        %v1545 = vpop.permute.xlu0 %1544
        %1548 = vset.pattern.permute.xlu0 0
        %1549 = vperm.xlu0 %1548, %v1475
        %v1550 = vpop.permute.xlu0 %1549
        %1553 = vset.pattern.permute.xlu0 0
        %1554 = vperm.xlu0 %1553, %v1476
        %v1555 = vpop.permute.xlu0 %1554
        %1557 = vmatprep.subr.mxu0 0.0
        %1558 = vmatpush1.msra.mxu0 %v1444
        %1559 = vmatprep.subr.mxu0 0.0
        %1560 = vmatpush1.msra.mxu0 %v1443
        %1561 = vmatprep.subr.mxu0 0.0
        %1562 = vmatpush1.msra.mxu0 %v1442
        %1563 = vmatprep.subr.mxu0 0.0
        %1564 = vmatpush1.msra.mxu0 %v1441
        %1565 = vmatprep.subr.mxu0 0.0
        %1566 = vmatpush1.msra.mxu0 %v1440
        %1567 = vmatprep.subr.mxu0 0.0
        %1568 = vmatpush1.msra.mxu0 %v1439
        %1569 = vmatprep.subr.mxu0 0.0
        %1570 = vmatpush1.msra.mxu0 %v1438
        %1571 = vmatprep.subr.mxu0 0.0
        %1572 = vmatpush1.msra.mxu0 %v1437
        %1573 = vmatprep.subr.mxu0 0.0
        %1574 = vmatpush1.msra.mxu0 %v1436
        %1575 = vmatprep.subr.mxu0 0.0
        %1576 = vmatpush1.msra.mxu0 %v1435
        %1577 = vmatprep.subr.mxu0 0.0
        %1578 = vmatpush1.msra.mxu0 %v1434
        %1579 = vmatprep.subr.mxu0 0.0
        %1580 = vmatpush1.msra.mxu0 %v1433
        %1581 = vmatprep.subr.mxu0 0.0
        %1582 = vmatpush1.msra.mxu0 %v1432
        %1583 = vmatprep.subr.mxu0 0.0
        %1584 = vmatpush1.msra.mxu0 %v1431
        %1585 = vmatprep.subr.mxu0 0.0
        %1586 = vmatpush1.msra.mxu0 %v1430
        %1587 = vmatprep.subr.mxu0 0.0
        %1588 = vmatpush1.msra.mxu0 %v1429
        %1589 = vmatprep.subr.mxu0 0.0
        %1590 = vmatpush2.msra.mxu0 0.0
        %1591 = vmatprep.subr.mxu0 0.0
        %1592 = vmatpush2.msra.mxu0 0.0
        %1593 = vmatprep.subr.mxu0 0.0
        %1594 = vmatpush2.msra.mxu0 0.0
        %1595 = vmatprep.subr.mxu0 0.0
        %1596 = vmatpush2.msra.mxu0 0.0
        %1597 = vmatprep.subr.mxu0 0.0
        %1598 = vmatpush2.msra.mxu0 0.0
        %1599 = vmatprep.subr.mxu0 0.0
        %1600 = vmatpush2.msra.mxu0 0.0
        %1601 = vmatprep.subr.mxu0 0.0
        %1602 = vmatpush2.msra.mxu0 0.0
        %1603 = vmatprep.subr.mxu0 0.0
        %1604 = vmatpush2.msra.mxu0 0.0
        %1605 = vmatprep.subr.mxu0 0.0
        %1606 = vmatpush2.msra.mxu0 0.0
        %1607 = vmatprep.subr.mxu0 0.0
        %1608 = vmatpush2.msra.mxu0 0.0
        %1609 = vmatprep.subr.mxu0 0.0
        %1610 = vmatpush2.msra.mxu0 0.0
        %1611 = vmatprep.subr.mxu0 0.0
        %1612 = vmatpush2.msra.mxu0 0.0
        %1613 = vmatprep.subr.mxu0 0.0
        %1614 = vmatpush2.msra.mxu0 0.0
        %1615 = vmatprep.subr.mxu0 0.0
        %1616 = vmatpush2.msra.mxu0 0.0
        %1617 = vmatprep.subr.mxu0 0.0
        %1618 = vmatpush2.msra.mxu0 0.0
        %1619 = vmatprep.subr.mxu0 0.0
        %1620 = vmatpush2.msra.mxu0 0.0
        %1621 = vmatprep.mubr.f32.mxu0 0.0
        %1622 = vmatmul.mubr.f32.gmra.mxu0 %v1445
        %v1623 = vpop.f32.mrf.mxu0
        %v1624 = vadd.f32 %v1480, %v1623
        %v1625 = vpop.f32.mrf.mxu0
        %1626 = vmatprep.mubr.f32.mxu0 0.0
        %1627 = vmatmul.mubr.f32.gmra.mxu0 %v1446
        %v1628 = vpop.f32.mrf.mxu0
        %v1629 = vadd.f32 %v1485, %v1628
        %v1630 = vpop.f32.mrf.mxu0
        %1631 = vmatprep.mubr.f32.mxu0 0.0
        %1632 = vmatmul.mubr.f32.gmra.mxu0 %v1447
        %v1633 = vpop.f32.mrf.mxu0
        %v1634 = vadd.f32 %v1490, %v1633
        %v1635 = vpop.f32.mrf.mxu0
        %1636 = vmatprep.mubr.f32.mxu0 0.0
        %1637 = vmatmul.mubr.f32.gmra.mxu0 %v1448
        %v1638 = vpop.f32.mrf.mxu0
        %v1639 = vadd.f32 %v1495, %v1638
        %v1640 = vpop.f32.mrf.mxu0
        %1641 = vmatprep.mubr.f32.mxu0 0.0
        %1642 = vmatmul.mubr.f32.gmra.mxu0 %v1449
        %v1643 = vpop.f32.mrf.mxu0
        %v1644 = vadd.f32 %v1500, %v1643
        %v1645 = vpop.f32.mrf.mxu0
        %1646 = vmatprep.mubr.f32.mxu0 0.0
        %1647 = vmatmul.mubr.f32.gmra.mxu0 %v1450
        %v1648 = vpop.f32.mrf.mxu0
        %v1649 = vadd.f32 %v1505, %v1648
        %v1650 = vpop.f32.mrf.mxu0
        %1651 = vmatprep.mubr.f32.mxu0 0.0
        %1652 = vmatmul.mubr.f32.gmra.mxu0 %v1451
        %v1653 = vpop.f32.mrf.mxu0
        %v1654 = vadd.f32 %v1510, %v1653
        %v1655 = vpop.f32.mrf.mxu0
        %1656 = vmatprep.mubr.f32.mxu0 0.0
        %1657 = vmatmul.mubr.f32.gmra.mxu0 %v1452
        %v1658 = vpop.f32.mrf.mxu0
        %v1659 = vadd.f32 %v1515, %v1658
        %v1660 = vpop.f32.mrf.mxu0
        %1661 = vmatprep.mubr.f32.mxu0 0.0
        %1662 = vmatmul.mubr.f32.gmra.mxu0 %v1453
        %v1663 = vpop.f32.mrf.mxu0
        %v1664 = vadd.f32 %v1520, %v1663
        %v1665 = vpop.f32.mrf.mxu0
        %1666 = vmatprep.mubr.f32.mxu0 0.0
        %1667 = vmatmul.mubr.f32.gmra.mxu0 %v1454
        %v1668 = vpop.f32.mrf.mxu0
        %v1669 = vadd.f32 %v1525, %v1668
        %v1670 = vpop.f32.mrf.mxu0
        %1671 = vmatprep.mubr.f32.mxu0 0.0
        %1672 = vmatmul.mubr.f32.gmra.mxu0 %v1455
        %v1673 = vpop.f32.mrf.mxu0
        %v1674 = vadd.f32 %v1530, %v1673
        %v1675 = vpop.f32.mrf.mxu0
        %1676 = vmatprep.mubr.f32.mxu0 0.0
        %1677 = vmatmul.mubr.f32.gmra.mxu0 %v1456
        %v1678 = vpop.f32.mrf.mxu0
        %v1679 = vadd.f32 %v1535, %v1678
        %v1680 = vpop.f32.mrf.mxu0
        %1681 = vmatprep.mubr.f32.mxu0 0.0
        %1682 = vmatmul.mubr.f32.gmra.mxu0 %v1457
        %v1683 = vpop.f32.mrf.mxu0
        %v1684 = vadd.f32 %v1540, %v1683
        %v1685 = vpop.f32.mrf.mxu0
        %1686 = vmatprep.mubr.f32.mxu0 0.0
        %1687 = vmatmul.mubr.f32.gmra.mxu0 %v1458
        %v1688 = vpop.f32.mrf.mxu0
        %v1689 = vadd.f32 %v1545, %v1688
        %v1690 = vpop.f32.mrf.mxu0
        %1691 = vmatprep.mubr.f32.mxu0 0.0
        %1692 = vmatmul.mubr.f32.gmra.mxu0 %v1459
        %v1693 = vpop.f32.mrf.mxu0
        %v1694 = vadd.f32 %v1550, %v1693
        %v1695 = vpop.f32.mrf.mxu0
        %1696 = vmatprep.mubr.f32.mxu0 0.0
        %1697 = vmatmul.mubr.f32.gmra.mxu0 %v1460
        %v1698 = vpop.f32.mrf.mxu0
        %v1699 = vadd.f32 %v1555, %v1698
        %v1700 = vpop.f32.mrf.mxu0
        %1701 = vdwg.mxu0
        %v1702 = vmax.f32 %v1624, 0.0
        %v1703 = vmax.f32 %v1629, 0.0
        %v1704 = vmax.f32 %v1634, 0.0
        %v1705 = vmax.f32 %v1639, 0.0
        %v1706 = vmax.f32 %v1644, 0.0
        %v1707 = vmax.f32 %v1649, 0.0
        %v1708 = vmax.f32 %v1654, 0.0
        %v1709 = vmax.f32 %v1659, 0.0
        %v1710 = vmax.f32 %v1664, 0.0
        %v1711 = vmax.f32 %v1669, 0.0
        %v1712 = vmax.f32 %v1674, 0.0
        %v1713 = vmax.f32 %v1679, 0.0
        %v1714 = vmax.f32 %v1684, 0.0
        %v1715 = vmax.f32 %v1689, 0.0
        %v1716 = vmax.f32 %v1694, 0.0
        %v1717 = vmax.f32 %v1699, 0.0
        %v1718 = vld [vmem:[%s11] sm:$0x1]
        %v1719 = vld [vmem:[#allocation2] sm:$0x1]
        %1721 = vset.pattern.permute.xlu0 0
        %1722 = vperm.xlu0 %1721, %v1719
        %v1723 = vpop.permute.xlu0 %1722
        %v1725 = vlaneseq
        %v1726 = vshrl.u32 %v1725, 7
        %v1727 = vsub.s32 0, %v1726
        %v1728 = vrot.slane %v1723, %v1727
        %1729 = vmatprep.subr.mxu0 0.0
        %1730 = vmatpush1.msra.mxu0 %v1717
        %1731 = vmatprep.subr.mxu0 0.0
        %1732 = vmatpush1.msra.mxu0 %v1716
        %1733 = vmatprep.subr.mxu0 0.0
        %1734 = vmatpush1.msra.mxu0 %v1715
        %1735 = vmatprep.subr.mxu0 0.0
        %1736 = vmatpush1.msra.mxu0 %v1714
        %1737 = vmatprep.subr.mxu0 0.0
        %1738 = vmatpush1.msra.mxu0 %v1713
        %1739 = vmatprep.subr.mxu0 0.0
        %1740 = vmatpush1.msra.mxu0 %v1712
        %1741 = vmatprep.subr.mxu0 0.0
        %1742 = vmatpush1.msra.mxu0 %v1711
        %1743 = vmatprep.subr.mxu0 0.0
        %1744 = vmatpush1.msra.mxu0 %v1710
        %1745 = vmatprep.subr.mxu0 0.0
        %1746 = vmatpush1.msra.mxu0 %v1709
        %1747 = vmatprep.subr.mxu0 0.0
        %1748 = vmatpush1.msra.mxu0 %v1708
        %1749 = vmatprep.subr.mxu0 0.0
        %1750 = vmatpush1.msra.mxu0 %v1707
        %1751 = vmatprep.subr.mxu0 0.0
        %1752 = vmatpush1.msra.mxu0 %v1706
        %1753 = vmatprep.subr.mxu0 0.0
        %1754 = vmatpush1.msra.mxu0 %v1705
        %1755 = vmatprep.subr.mxu0 0.0
        %1756 = vmatpush1.msra.mxu0 %v1704
        %1757 = vmatprep.subr.mxu0 0.0
        %1758 = vmatpush1.msra.mxu0 %v1703
        %1759 = vmatprep.subr.mxu0 0.0
        %1760 = vmatpush1.msra.mxu0 %v1702
        %1761 = vmatprep.subr.mxu0 0.0
        %1762 = vmatpush2.msra.mxu0 0.0
        %1763 = vmatprep.subr.mxu0 0.0
        %1764 = vmatpush2.msra.mxu0 0.0
        %1765 = vmatprep.subr.mxu0 0.0
        %1766 = vmatpush2.msra.mxu0 0.0
        %1767 = vmatprep.subr.mxu0 0.0
        %1768 = vmatpush2.msra.mxu0 0.0
        %1769 = vmatprep.subr.mxu0 0.0
        %1770 = vmatpush2.msra.mxu0 0.0
        %1771 = vmatprep.subr.mxu0 0.0
        %1772 = vmatpush2.msra.mxu0 0.0
        %1773 = vmatprep.subr.mxu0 0.0
        %1774 = vmatpush2.msra.mxu0 0.0
        %1775 = vmatprep.subr.mxu0 0.0
        %1776 = vmatpush2.msra.mxu0 0.0
        %1777 = vmatprep.subr.mxu0 0.0
        %1778 = vmatpush2.msra.mxu0 0.0
        %1779 = vmatprep.subr.mxu0 0.0
        %1780 = vmatpush2.msra.mxu0 0.0
        %1781 = vmatprep.subr.mxu0 0.0
        %1782 = vmatpush2.msra.mxu0 0.0
        %1783 = vmatprep.subr.mxu0 0.0
        %1784 = vmatpush2.msra.mxu0 0.0
        %1785 = vmatprep.subr.mxu0 0.0
        %1786 = vmatpush2.msra.mxu0 0.0
        %1787 = vmatprep.subr.mxu0 0.0
        %1788 = vmatpush2.msra.mxu0 0.0
        %1789 = vmatprep.subr.mxu0 0.0
        %1790 = vmatpush2.msra.mxu0 0.0
        %1791 = vmatprep.subr.mxu0 0.0
        %1792 = vmatpush2.msra.mxu0 0.0
        %1793 = vmatprep.mubr.f32.mxu0 0.0
        %1794 = vmatmul.mubr.f32.gmra.mxu0 %v1718
        %v1795 = vpop.f32.mrf.mxu0
        %v1796 = vadd.f32 %v1728, %v1795
        %v1797 = vpop.f32.mrf.mxu0
        %1798 = vdwg.mxu0
        %1799 = vst [vmem:[%s454] sm:$0x1] %v1796
        %s1800 = sand.u32 %s331, 1
        %s1801 = scalar_lea.sflag [#allocation4], %s1800
        %s1802 = sand.u32 %s331, 1
        %s1803 = scalar_lea.vmem [#allocation3], %s1802
        // Predicated region
        $region73: #{tpu_custom_call.1} parent=71 // pred_check
          %p1804 = pneg %p341
        $region74: #{tpu_custom_call.1} parent=71 // pred_check_branch
          %1806 = sbr.rel (%p1804) target = $region76
        $region75: #{tpu_custom_call.1} parent=71 // pred_region
          %s1808 = ssub.s32 16, 16
          %1809 = vsyncadd %s1801, %s1808
          %s1810 = sadd.s32 %s34, %s33
          %s1811 = smul.addr %s1810, 16
          %s1812 = scalar_lea.hbm %s13, %s1811
          %s1814 = sshll.u32 %s1803, 4
          %s1815 = int_to_ptr.vmem [resolvable:$true] %s1814
          %1817 = dma.vmem_to_hbm [thread:$0]  %s1815, 16, %s1812, %s1801
        $region76: #{tpu_custom_call.1} parent=71 // pred_fallthru
          _
      $region72: #{tpu_custom_call.1} parent=5 // pred_fallthru
        _
      %p1818 = scmp.le.s32.totalorder 2, %s24
      // Predicated region
      $region77: #{tpu_custom_call.1} parent=5 // pred_check
        %p1819 = pneg %p1818
      $region78: #{tpu_custom_call.1} parent=5 // pred_check_branch
        %1821 = sbr.rel (%p1819) target = $region80
      $region79: #{tpu_custom_call.1} parent=5 // pred_region
        %s1822 = ssub.s32 %s24, 2
        // Predicated region
        $region81: #{tpu_custom_call.1} parent=79 // pred_check
          %p1823 = pneg %p347
        $region82: #{tpu_custom_call.1} parent=79 // pred_check_branch
          %1825 = sbr.rel (%p1823) target = $region84
        $region83: #{tpu_custom_call.1} parent=79 // pred_region
          %s1826 = sand.u32 %s332, 1
          %s1827 = scalar_lea.sflag [#allocation4], %s1826
          %s1828 = sand.u32 %s332, 1
          %s1829 = scalar_lea.vmem [#allocation3], %s1828
          %1830 = dma.done %s1827, 16
        $region84: #{tpu_custom_call.1} parent=79 // pred_fallthru
          _
      $region80: #{tpu_custom_call.1} parent=5 // pred_fallthru
        _
    $region6: #{tpu_custom_call.1} parent=1 // loop_footer
      %s28 = sadd.s32 1, %s24
    $region7: #{tpu_custom_call.1} parent=1 // loop_footer_branch
      %23 = sbr.rel target = $region3
    $region8: #{tpu_custom_call.1} parent=1 // loop_exit
      _
    %1831 = vsyncpa [#allocation4], 1
    %s1832 = scalar_lea.sflag [#allocation4], 1
    %1833 = vsyncpa %s1832, 1

</llo_original>
